<compile_context>
chip_gen: v5e
topology: v5e:2x2
jax: 0.10.0
libtpu: 0.0.40
codegen_flags: <defaults>
</compile_context>

<pallas_src>
import functools
import math

import jax
import jax.numpy as jnp
from jax.experimental import pallas as pl
from jax.experimental.pallas import tpu as pltpu


def _round_up(v, m):
    return (v + m - 1) // m * m


def _aspp_stage_kernel(x_ref, w_ref, o_ref, xpad_ref, *, rates, H, W, off0, eps):
    """One (sample, stage) grid step.

    x_ref   : (1, Cin, H*W)      unpadded sample, channel-major, spatial lane-dense
    w_ref   : (1, 9, Cout, Cin)  this stage's taps (stage 0: only tap 4 nonzero)
    o_ref   : (1, 1, Cout, H*W)  this stage's slab of the NCHW-flat output
    xpad_ref: (Cin, L)           flat zero-slacked copy of the sample (persists
                                 across the stage axis; filled when stage == 0)
    """
    s = pl.program_id(1)
    HW = H * W

    # ---- fill padded scratch once per sample (stage axis is sequential) -----
    @pl.when(s == 0)
    def _():
        xpad_ref[...] = jnp.zeros(xpad_ref.shape, xpad_ref.dtype)
        xpad_ref[:, off0:off0 + HW] = x_ref[0].astype(xpad_ref.dtype)

    # Centre tap == the whole 1x1 stage, and tap (1,1) of every dilated stage.
    xc = xpad_ref[:, off0:off0 + HW]                       # (Cin, H*W)
    center = jnp.dot(w_ref[0, 4], xc, preferred_element_type=jnp.float32)

    inv_hw = jnp.float32(1.0 / HW)

    def norm_relu_store(acc):
        # Two-pass InstanceNorm2d (biased var, f32) + ReLU, lane-dense store.
        mean = jnp.sum(acc, axis=1, keepdims=True) * inv_hw       # (Cout, 1)
        cen = acc - mean
        var = jnp.sum(cen * cen, axis=1, keepdims=True) * inv_hw  # (Cout, 1)
        y = jnp.maximum(cen * jax.lax.rsqrt(var + eps), 0.0)
        o_ref[0, 0] = y.astype(o_ref.dtype)

    # ---- stage 0: 1x1 conv (centre tap only) --------------------------------
    @pl.when(s == 0)
    def _():
        norm_relu_store(center)

    # ---- dilated 3x3 stages: 8 more accumulated matmuls, static offsets -----
    col = jax.lax.broadcasted_iota(jnp.int32, (1, HW), 1) % W     # lane col idx

    for ss in range(1, 1 + len(rates)):
        r = int(rates[ss - 1])

        @pl.when(s == ss)
        def _(r=r):
            mask_l = col >= r                # tap column offset -r valid lanes
            mask_r = col < (W - r)           # tap column offset +r valid lanes
            acc = center
            for kh in range(3):
                for kw in range(3):
                    if kh == 1 and kw == 1:
                        continue             # centre tap already accumulated
                    start = off0 + (kh - 1) * r * W + (kw - 1) * r  # static int
                    xs = xpad_ref[:, start:start + HW]              # (Cin, H*W)
                    if kw == 0:
                        xs = jnp.where(mask_l, xs, jnp.zeros_like(xs))
                    elif kw == 2:
                        xs = jnp.where(mask_r, xs, jnp.zeros_like(xs))
                    acc = acc + jnp.dot(w_ref[0, kh * 3 + kw], xs,
                                        preferred_element_type=jnp.float32)
            norm_relu_store(acc)


def aspp_forward(x_nchw, weights, rates, *, compute_dtype=None, eps=1e-5):
    """ASPP forward. x_nchw: (N, Cin, H, W) -> (N, Cout*(1+len(rates)), H, W).

    weights[0]  : (Cout, Cin)        stage c0 1x1 conv weight  (torch OI)
    weights[i+1]: (Cout, Cin, 3, 3)  dilated stage i weight    (torch OIHW)
    """
    N, Cin, H, W = x_nchw.shape
    Cout = weights[0].shape[0]
    rates = tuple(int(r) for r in rates)
    S = 1 + len(rates)
    HW = H * W
    pad = max((1,) + rates)

    cdtype = jnp.dtype(compute_dtype) if compute_dtype is not None else x_nchw.dtype
    out_dtype = x_nchw.dtype

    # Flat padded-buffer geometry: valid data at [off0, off0 + H*W); slack of
    # >= pad*(W+1) zeros on each side absorbs all row-out-of-range taps.
    slack = pad * (W + 1)
    off0 = _round_up(slack, 128)          # lane-aligned interior copy
    L = _round_up(off0 + HW + slack, 128)

    # Metadata-only reshape (NCHW is already channel-major / spatial-contiguous).
    x_flat = x_nchw.reshape(N, Cin, HW).astype(cdtype)

    # Pack per-stage tap weights: (S, 9, Cout, Cin); stage 0 only centre tap.
    w_all = jnp.zeros((S, 9, Cout, Cin), cdtype)
    w_all = w_all.at[0, 4].set(weights[0].astype(cdtype))
    for i, w in enumerate(weights[1:]):
        w_hw = jnp.transpose(w.astype(cdtype), (2, 3, 0, 1)).reshape(9, Cout, Cin)
        w_all = w_all.at[i + 1].set(w_hw)

    kernel = functools.partial(_aspp_stage_kernel, rates=rates, H=H, W=W,
                               off0=off0, eps=eps)

    # VMEM budget: double-buffered blocks + the persistent padded scratch
    # + headroom for f32 accumulator / norm temporaries.
    bpe_c = jnp.dtype(cdtype).itemsize
    bpe_o = jnp.dtype(out_dtype).itemsize
    est = (2 * Cin * HW * bpe_c           # input block (db)
           + 2 * 9 * Cout * Cin * bpe_c   # per-stage weight block (db)
           + 2 * Cout * HW * bpe_o        # per-stage output block (db)
           + Cin * L * bpe_c              # padded-input scratch
           + 3 * Cout * HW * 4)           # f32 acc + norm temporaries
    try:
        cap = int(pltpu.get_tpu_info().vmem_capacity_bytes)
    except Exception:                     # pragma: no cover - conservative default
        cap = 64 * 2**20
    vmem_bytes = int(min(max(2 * est, 16 * 2**20), cap - 8 * 2**20))

    cost = pl.CostEstimate(
        flops=2 * N * HW * Cin * Cout * (1 + 9 * len(rates)),
        transcendentals=N * S * Cout,
        bytes_accessed=int(N * Cin * HW * bpe_c
                           + S * 9 * Cout * Cin * bpe_c
                           + N * S * Cout * HW * bpe_o),
    )

    out = pl.pallas_call(
        kernel,
        out_shape=jax.ShapeDtypeStruct((N, S, Cout, HW), out_dtype),
        grid_spec=pltpu.PrefetchScalarGridSpec(
            num_scalar_prefetch=0,
            grid=(N, S),
            in_specs=[
                pl.BlockSpec((1, Cin, HW), lambda n, s: (n, 0, 0)),
                pl.BlockSpec((1, 9, Cout, Cin), lambda n, s: (s, 0, 0, 0)),
            ],
            out_specs=pl.BlockSpec((1, 1, Cout, HW), lambda n, s: (n, s, 0, 0)),
            scratch_shapes=[pltpu.VMEM((Cin, L), cdtype)],
        ),
        compiler_params=pltpu.CompilerParams(
            dimension_semantics=("parallel", "arbitrary"),
            vmem_limit_bytes=vmem_bytes),
        cost_estimate=cost,
    )(x_flat, w_all)

    # (N, S, Cout, H*W) -> (N, S*Cout, H, W): contiguous, metadata-only reshape.
    # Channel order matches torch.cat(dim=1) over the stages.
    return out.reshape(N, S * Cout, H, W)


def init_aspp_params(key, in_ch, out_ch, rates):
    """Deterministic weights mimicking Conv2d kaiming-uniform-like bounds (OIHW)."""
    keys = jax.random.split(key, len(rates) + 1)
    b0 = 1.0 / math.sqrt(in_ch)
    weights = [jax.random.uniform(keys[0], (out_ch, in_ch), jnp.float32,
                                  minval=-b0, maxval=b0)]
    b = 1.0 / math.sqrt(in_ch * 9)
    for i, _ in enumerate(rates):
        weights.append(jax.random.uniform(keys[i + 1], (out_ch, in_ch, 3, 3),
                                          jnp.float32, minval=-b, maxval=b))
    return weights


def _reference_forward(x_nchw, weights, rates, eps=1e-5):
    """Pure-JAX reference (conv_general_dilated + InstanceNorm2d + ReLU + concat)."""
    stages = [(weights[0][:, :, None, None], 1, 0)]
    stages += [(w, int(r), int(r)) for w, r in zip(weights[1:], rates)]
    outs = []
    for w, r, p in stages:
        dn = jax.lax.conv_dimension_numbers(x_nchw.shape, w.shape,
                                            ("NCHW", "OIHW", "NCHW"))
        y = jax.lax.conv_general_dilated(
            x_nchw, w, window_strides=(1, 1), padding=((p, p), (p, p)),
            rhs_dilation=(r, r), dimension_numbers=dn)
        mean = jnp.mean(y, axis=(2, 3), keepdims=True)
        var = jnp.mean((y - mean) ** 2, axis=(2, 3), keepdims=True)
        outs.append(jnp.maximum((y - mean) * jax.lax.rsqrt(var + eps), 0.0))
    return jnp.concatenate(outs, axis=1)


if __name__ == "__main__":
    key = jax.random.PRNGKey(0)
    kx, kw = jax.random.split(key)

    N, in_ch, H, W = 2, 4, 16, 16
    out_ch = 4
    rates = (2, 4)

    x = jax.random.normal(kx, (N, in_ch, H, W), jnp.float32)
    weights = init_aspp_params(kw, in_ch, out_ch, rates)

    out = jax.block_until_ready(aspp_forward(x, weights, rates))
    assert out.shape == (N, out_ch * (1 + len(rates)), H, W), out.shape

    ref = jax.block_until_ready(_reference_forward(x, weights, rates))
    max_err = float(jnp.max(jnp.abs(out - ref)))
    assert jnp.allclose(out, ref, rtol=1e-4, atol=1e-4), max_err

    print("KERNEL_OK")
</pallas_src>

<mosaic_0001>
module attributes {stable_mosaic.version = 11 : i64} {
  func.func @_aspp_stage_kernel(%arg0: i32, %arg1: i32, %arg2: memref<1x4x256xf32, #tpu.memory_space<vmem>>, %arg3: memref<1x9x4x4xf32, #tpu.memory_space<vmem>>, %arg4: memref<1x1x4x256xf32, #tpu.memory_space<vmem>>, %arg5: memref<4x512xf32, #tpu.memory_space<vmem>>) attributes {dimension_semantics = [#tpu.dimension_semantics<parallel>, #tpu.dimension_semantics<arbitrary>], iteration_bounds = array<i64: 2, 3>, scalar_prefetch = 0 : i64, scratch_operands = 1 : i64, tpu.core_type = #tpu.core_type<tc>, window_params = [{transform_indices = @transform_0, window_bounds = array<i64: 1, 4, 256>}, {transform_indices = @transform_1, window_bounds = array<i64: 1, 9, 4, 4>}, {transform_indices = @transform_2, window_bounds = array<i64: 1, 1, 4, 256>}]} {
    %c0_i32 = arith.constant 0 : i32
    %0 = arith.cmpi eq, %arg1, %c0_i32 : i32
    %1 = arith.extui %0 : i1 to i32
    %c0_i32_0 = arith.constant 0 : i32
    %2 = arith.cmpi ne, %1, %c0_i32_0 : i32
    scf.if %2 {
      %cst_16 = arith.constant 0.000000e+00 : f32
      %33 = vector.broadcast %cst_16 : f32 to vector<4x512xf32>
      %c0_17 = arith.constant 0 : index
      %c0_18 = arith.constant 0 : index
      %34 = vector.load %arg5[%c0_17, %c0_18] : memref<4x512xf32, #tpu.memory_space<vmem>>, vector<4x512xf32>
      tpu.vector_store %arg5[%c0_17, %c0_18], %33 {strides = array<i32>} : memref<4x512xf32, #tpu.memory_space<vmem>>, vector<4x512xf32>,
      %c0_19 = arith.constant 0 : index
      %c0_20 = arith.constant 0 : index
      %c0_21 = arith.constant 0 : index
      %35 = vector.load %arg2[%c0_19, %c0_20, %c0_21] : memref<1x4x256xf32, #tpu.memory_space<vmem>>, vector<1x4x256xf32>
      %36 = vector.shape_cast %35 : vector<1x4x256xf32> to vector<4x256xf32>
      %c0_22 = arith.constant 0 : index
      %c128_23 = arith.constant 128 : index
      %37 = vector.load %arg5[%c0_22, %c128_23] : memref<4x512xf32, #tpu.memory_space<vmem>>, vector<4x256xf32>
      tpu.vector_store %arg5[%c0_22, %c128_23], %36 {strides = array<i32>} : memref<4x512xf32, #tpu.memory_space<vmem>>, vector<4x256xf32>,
    } else {
    }
    %c0 = arith.constant 0 : index
    %c128 = arith.constant 128 : index
    %3 = vector.load %arg5[%c0, %c128] : memref<4x512xf32, #tpu.memory_space<vmem>>, vector<4x256xf32>
    %c0_1 = arith.constant 0 : index
    %c4 = arith.constant 4 : index
    %c0_2 = arith.constant 0 : index
    %c0_3 = arith.constant 0 : index
    %4 = vector.load %arg3[%c0_1, %c4, %c0_2, %c0_3] : memref<1x9x4x4xf32, #tpu.memory_space<vmem>>, vector<1x1x4x4xf32>
    %5 = vector.shape_cast %4 : vector<1x1x4x4xf32> to vector<4x4xf32>
    %cst = arith.constant dense<0.000000e+00> : vector<4x256xf32>
    %6 = tpu.matmul %5, %3, %cst {dimension_numbers = #tpu.dot_dimension_numbers<[1], [0], [0], [1], [0, 0, 1, 1], [], []>} : vector<4x4xf32>, vector<4x256xf32>, vector<4x256xf32> -> vector<4x256xf32>
    %c0_i32_4 = arith.constant 0 : i32
    %7 = arith.cmpi eq, %arg1, %c0_i32_4 : i32
    %8 = arith.extui %7 : i1 to i32
    %cst_5 = arith.constant 3.906250e-03 : f32
    %c0_i32_6 = arith.constant 0 : i32
    %9 = arith.cmpi ne, %8, %c0_i32_6 : i32
    scf.if %9 {
      %cst_16 = arith.constant dense<0.000000e+00> : vector<4xf32>
      %33 = vector.multi_reduction <add>, %6, %cst_16 [1] : vector<4x256xf32> to vector<4xf32>
      %34 = vector.shape_cast %33 : vector<4xf32> to vector<4x1xf32>
      %35 = vector.broadcast %cst_5 : f32 to vector<4x1xf32>
      %36 = arith.mulf %34, %35 : vector<4x1xf32>
      %37 = vector.broadcast %36 : vector<4x1xf32> to vector<4x256xf32>
      %38 = arith.subf %6, %37 : vector<4x256xf32>
      %39 = arith.mulf %38, %38 : vector<4x256xf32>
      %cst_17 = arith.constant dense<0.000000e+00> : vector<4xf32>
      %40 = vector.multi_reduction <add>, %39, %cst_17 [1] : vector<4x256xf32> to vector<4xf32>
      %41 = vector.shape_cast %40 : vector<4xf32> to vector<4x1xf32>
      %42 = vector.broadcast %cst_5 : f32 to vector<4x1xf32>
      %43 = arith.mulf %41, %42 : vector<4x1xf32>
      %cst_18 = arith.constant 9.99999974E-6 : f32
      %44 = vector.broadcast %cst_18 : f32 to vector<4x1xf32>
      %45 = arith.addf %43, %44 : vector<4x1xf32>
      %46 = math.rsqrt %45 : vector<4x1xf32>
      %47 = vector.broadcast %46 : vector<4x1xf32> to vector<4x256xf32>
      %48 = arith.mulf %38, %47 : vector<4x256xf32>
      %cst_19 = arith.constant 0.000000e+00 : f32
      %49 = vector.broadcast %cst_19 : f32 to vector<4x256xf32>
      %50 = arith.maximumf %48, %49 : vector<4x256xf32>
      %c0_20 = arith.constant 0 : index
      %c0_21 = arith.constant 0 : index
      %c0_22 = arith.constant 0 : index
      %c0_23 = arith.constant 0 : index
      %51 = vector.load %arg4[%c0_20, %c0_21, %c0_22, %c0_23] : memref<1x1x4x256xf32, #tpu.memory_space<vmem>>, vector<1x1x4x256xf32>
      %52 = vector.shape_cast %51 : vector<1x1x4x256xf32> to vector<4x256xf32>
      %53 = vector.shape_cast %50 : vector<4x256xf32> to vector<1x1x4x256xf32>
      tpu.vector_store %arg4[%c0_20, %c0_21, %c0_22, %c0_23], %53 {strides = array<i32>} : memref<1x1x4x256xf32, #tpu.memory_space<vmem>>, vector<1x1x4x256xf32>,
    } else {
    }
    %10 = tpu.iota {dimensions = array<i32: 1>} : vector<1x256xi32>
    %c16_i32 = arith.constant 16 : i32
    %c0_i32_7 = arith.constant 0 : i32
    %11 = arith.cmpi eq, %c16_i32, %c0_i32_7 : i32
    %c1_i32 = arith.constant 1 : i32
    %12 = arith.select %11, %c1_i32, %c16_i32 : i32
    %13 = vector.broadcast %12 : i32 to vector<1x256xi32>
    %14 = arith.remsi %10, %13 : vector<1x256xi32>
    %c0_i32_8 = arith.constant 0 : i32
    %15 = vector.broadcast %c0_i32_8 : i32 to vector<1x256xi32>
    %16 = arith.cmpi ne, %14, %15 : vector<1x256xi32>
    %c0_i32_9 = arith.constant 0 : i32
    %17 = vector.broadcast %c0_i32_9 : i32 to vector<1x256xi32>
    %18 = arith.cmpi slt, %14, %17 : vector<1x256xi32>
    %c0_i32_10 = arith.constant 0 : i32
    %19 = arith.cmpi slt, %12, %c0_i32_10 : i32
    %20 = vector.broadcast %19 : i1 to vector<1x256xi1>
    %21 = vector.broadcast %20 : vector<1x256xi1> to vector<1x256xi1>
    %22 = arith.xori %18, %21 : vector<1x256xi1>
    %23 = arith.andi %22, %16 : vector<1x256xi1>
    %24 = vector.broadcast %12 : i32 to vector<1x256xi32>
    %25 = arith.addi %14, %24 : vector<1x256xi32>
    %26 = arith.select %23, %25, %14 : vector<1x256xi1>, vector<1x256xi32>
    %c1_i32_11 = arith.constant 1 : i32
    %27 = arith.cmpi eq, %arg1, %c1_i32_11 : i32
    %28 = arith.extui %27 : i1 to i32
    %cst_12 = arith.constant 3.906250e-03 : f32
    %c0_i32_13 = arith.constant 0 : i32
    %29 = arith.cmpi ne, %28, %c0_i32_13 : i32
    scf.if %29 {
      %c2_i32_16 = arith.constant 2 : i32
      %33 = vector.broadcast %c2_i32_16 : i32 to vector<1x256xi32>
      %34 = arith.cmpi sge, %26, %33 : vector<1x256xi32>
      %c14_i32 = arith.constant 14 : i32
      %35 = vector.broadcast %c14_i32 : i32 to vector<1x256xi32>
      %36 = arith.cmpi slt, %26, %35 : vector<1x256xi32>
      %c0_17 = arith.constant 0 : index
      %c94 = arith.constant 94 : index
      %37 = vector.load %arg5[%c0_17, %c94] : memref<4x512xf32, #tpu.memory_space<vmem>>, vector<4x256xf32>
      %cst_18 = arith.constant 0.000000e+00 : f32
      %38 = vector.broadcast %cst_18 : f32 to vector<4x256xf32>
      %39 = vector.shape_cast %34 : vector<1x256xi1> to vector<1x256xi1>
      %40 = vector.broadcast %39 : vector<1x256xi1> to vector<4x256xi1>
      %41 = arith.select %40, %37, %38 : vector<4x256xi1>, vector<4x256xf32>
      %c0_19 = arith.constant 0 : index
      %c0_20 = arith.constant 0 : index
      %c0_21 = arith.constant 0 : index
      %c0_22 = arith.constant 0 : index
      %42 = vector.load %arg3[%c0_19, %c0_20, %c0_21, %c0_22] : memref<1x9x4x4xf32, #tpu.memory_space<vmem>>, vector<1x1x4x4xf32>
      %43 = vector.shape_cast %42 : vector<1x1x4x4xf32> to vector<4x4xf32>
      %cst_23 = arith.constant dense<0.000000e+00> : vector<4x256xf32>
      %44 = tpu.matmul %43, %41, %cst_23 {dimension_numbers = #tpu.dot_dimension_numbers<[1], [0], [0], [1], [0, 0, 1, 1], [], []>} : vector<4x4xf32>, vector<4x256xf32>, vector<4x256xf32> -> vector<4x256xf32>
      %45 = arith.addf %6, %44 : vector<4x256xf32>
      %c0_24 = arith.constant 0 : index
      %c96 = arith.constant 96 : index
      %46 = vector.load %arg5[%c0_24, %c96] : memref<4x512xf32, #tpu.memory_space<vmem>>, vector<4x256xf32>
      %c0_25 = arith.constant 0 : index
      %c1 = arith.constant 1 : index
      %c0_26 = arith.constant 0 : index
      %c0_27 = arith.constant 0 : index
      %47 = vector.load %arg3[%c0_25, %c1, %c0_26, %c0_27] : memref<1x9x4x4xf32, #tpu.memory_space<vmem>>, vector<1x1x4x4xf32>
      %48 = vector.shape_cast %47 : vector<1x1x4x4xf32> to vector<4x4xf32>
      %cst_28 = arith.constant dense<0.000000e+00> : vector<4x256xf32>
      %49 = tpu.matmul %48, %46, %cst_28 {dimension_numbers = #tpu.dot_dimension_numbers<[1], [0], [0], [1], [0, 0, 1, 1], [], []>} : vector<4x4xf32>, vector<4x256xf32>, vector<4x256xf32> -> vector<4x256xf32>
      %50 = arith.addf %45, %49 : vector<4x256xf32>
      %c0_29 = arith.constant 0 : index
      %c98 = arith.constant 98 : index
      %51 = vector.load %arg5[%c0_29, %c98] : memref<4x512xf32, #tpu.memory_space<vmem>>, vector<4x256xf32>
      %cst_30 = arith.constant 0.000000e+00 : f32
      %52 = vector.broadcast %cst_30 : f32 to vector<4x256xf32>
      %53 = vector.shape_cast %36 : vector<1x256xi1> to vector<1x256xi1>
      %54 = vector.broadcast %53 : vector<1x256xi1> to vector<4x256xi1>
      %55 = arith.select %54, %51, %52 : vector<4x256xi1>, vector<4x256xf32>
      %c0_31 = arith.constant 0 : index
      %c2 = arith.constant 2 : index
      %c0_32 = arith.constant 0 : index
      %c0_33 = arith.constant 0 : index
      %56 = vector.load %arg3[%c0_31, %c2, %c0_32, %c0_33] : memref<1x9x4x4xf32, #tpu.memory_space<vmem>>, vector<1x1x4x4xf32>
      %57 = vector.shape_cast %56 : vector<1x1x4x4xf32> to vector<4x4xf32>
      %cst_34 = arith.constant dense<0.000000e+00> : vector<4x256xf32>
      %58 = tpu.matmul %57, %55, %cst_34 {dimension_numbers = #tpu.dot_dimension_numbers<[1], [0], [0], [1], [0, 0, 1, 1], [], []>} : vector<4x4xf32>, vector<4x256xf32>, vector<4x256xf32> -> vector<4x256xf32>
      %59 = arith.addf %50, %58 : vector<4x256xf32>
      %c0_35 = arith.constant 0 : index
      %c126 = arith.constant 126 : index
      %60 = vector.load %arg5[%c0_35, %c126] : memref<4x512xf32, #tpu.memory_space<vmem>>, vector<4x256xf32>
      %cst_36 = arith.constant 0.000000e+00 : f32
      %61 = vector.broadcast %cst_36 : f32 to vector<4x256xf32>
      %62 = vector.shape_cast %34 : vector<1x256xi1> to vector<1x256xi1>
      %63 = vector.broadcast %62 : vector<1x256xi1> to vector<4x256xi1>
      %64 = arith.select %63, %60, %61 : vector<4x256xi1>, vector<4x256xf32>
      %c0_37 = arith.constant 0 : index
      %c3 = arith.constant 3 : index
      %c0_38 = arith.constant 0 : index
      %c0_39 = arith.constant 0 : index
      %65 = vector.load %arg3[%c0_37, %c3, %c0_38, %c0_39] : memref<1x9x4x4xf32, #tpu.memory_space<vmem>>, vector<1x1x4x4xf32>
      %66 = vector.shape_cast %65 : vector<1x1x4x4xf32> to vector<4x4xf32>
      %cst_40 = arith.constant dense<0.000000e+00> : vector<4x256xf32>
      %67 = tpu.matmul %66, %64, %cst_40 {dimension_numbers = #tpu.dot_dimension_numbers<[1], [0], [0], [1], [0, 0, 1, 1], [], []>} : vector<4x4xf32>, vector<4x256xf32>, vector<4x256xf32> -> vector<4x256xf32>
      %68 = arith.addf %59, %67 : vector<4x256xf32>
      %c0_41 = arith.constant 0 : index
      %c130 = arith.constant 130 : index
      %69 = vector.load %arg5[%c0_41, %c130] : memref<4x512xf32, #tpu.memory_space<vmem>>, vector<4x256xf32>
      %cst_42 = arith.constant 0.000000e+00 : f32
      %70 = vector.broadcast %cst_42 : f32 to vector<4x256xf32>
      %71 = vector.shape_cast %36 : vector<1x256xi1> to vector<1x256xi1>
      %72 = vector.broadcast %71 : vector<1x256xi1> to vector<4x256xi1>
      %73 = arith.select %72, %69, %70 : vector<4x256xi1>, vector<4x256xf32>
      %c0_43 = arith.constant 0 : index
      %c5 = arith.constant 5 : index
      %c0_44 = arith.constant 0 : index
      %c0_45 = arith.constant 0 : index
      %74 = vector.load %arg3[%c0_43, %c5, %c0_44, %c0_45] : memref<1x9x4x4xf32, #tpu.memory_space<vmem>>, vector<1x1x4x4xf32>
      %75 = vector.shape_cast %74 : vector<1x1x4x4xf32> to vector<4x4xf32>
      %cst_46 = arith.constant dense<0.000000e+00> : vector<4x256xf32>
      %76 = tpu.matmul %75, %73, %cst_46 {dimension_numbers = #tpu.dot_dimension_numbers<[1], [0], [0], [1], [0, 0, 1, 1], [], []>} : vector<4x4xf32>, vector<4x256xf32>, vector<4x256xf32> -> vector<4x256xf32>
      %77 = arith.addf %68, %76 : vector<4x256xf32>
      %c0_47 = arith.constant 0 : index
      %c158 = arith.constant 158 : index
      %78 = vector.load %arg5[%c0_47, %c158] : memref<4x512xf32, #tpu.memory_space<vmem>>, vector<4x256xf32>
      %cst_48 = arith.constant 0.000000e+00 : f32
      %79 = vector.broadcast %cst_48 : f32 to vector<4x256xf32>
      %80 = vector.shape_cast %34 : vector<1x256xi1> to vector<1x256xi1>
      %81 = vector.broadcast %80 : vector<1x256xi1> to vector<4x256xi1>
      %82 = arith.select %81, %78, %79 : vector<4x256xi1>, vector<4x256xf32>
      %c0_49 = arith.constant 0 : index
      %c6 = arith.constant 6 : index
      %c0_50 = arith.constant 0 : index
      %c0_51 = arith.constant 0 : index
      %83 = vector.load %arg3[%c0_49, %c6, %c0_50, %c0_51] : memref<1x9x4x4xf32, #tpu.memory_space<vmem>>, vector<1x1x4x4xf32>
      %84 = vector.shape_cast %83 : vector<1x1x4x4xf32> to vector<4x4xf32>
      %cst_52 = arith.constant dense<0.000000e+00> : vector<4x256xf32>
      %85 = tpu.matmul %84, %82, %cst_52 {dimension_numbers = #tpu.dot_dimension_numbers<[1], [0], [0], [1], [0, 0, 1, 1], [], []>} : vector<4x4xf32>, vector<4x256xf32>, vector<4x256xf32> -> vector<4x256xf32>
      %86 = arith.addf %77, %85 : vector<4x256xf32>
      %c0_53 = arith.constant 0 : index
      %c160 = arith.constant 160 : index
      %87 = vector.load %arg5[%c0_53, %c160] : memref<4x512xf32, #tpu.memory_space<vmem>>, vector<4x256xf32>
      %c0_54 = arith.constant 0 : index
      %c7 = arith.constant 7 : index
      %c0_55 = arith.constant 0 : index
      %c0_56 = arith.constant 0 : index
      %88 = vector.load %arg3[%c0_54, %c7, %c0_55, %c0_56] : memref<1x9x4x4xf32, #tpu.memory_space<vmem>>, vector<1x1x4x4xf32>
      %89 = vector.shape_cast %88 : vector<1x1x4x4xf32> to vector<4x4xf32>
      %cst_57 = arith.constant dense<0.000000e+00> : vector<4x256xf32>
      %90 = tpu.matmul %89, %87, %cst_57 {dimension_numbers = #tpu.dot_dimension_numbers<[1], [0], [0], [1], [0, 0, 1, 1], [], []>} : vector<4x4xf32>, vector<4x256xf32>, vector<4x256xf32> -> vector<4x256xf32>
      %91 = arith.addf %86, %90 : vector<4x256xf32>
      %c0_58 = arith.constant 0 : index
      %c162 = arith.constant 162 : index
      %92 = vector.load %arg5[%c0_58, %c162] : memref<4x512xf32, #tpu.memory_space<vmem>>, vector<4x256xf32>
      %cst_59 = arith.constant 0.000000e+00 : f32
      %93 = vector.broadcast %cst_59 : f32 to vector<4x256xf32>
      %94 = vector.shape_cast %36 : vector<1x256xi1> to vector<1x256xi1>
      %95 = vector.broadcast %94 : vector<1x256xi1> to vector<4x256xi1>
      %96 = arith.select %95, %92, %93 : vector<4x256xi1>, vector<4x256xf32>
      %c0_60 = arith.constant 0 : index
      %c8 = arith.constant 8 : index
      %c0_61 = arith.constant 0 : index
      %c0_62 = arith.constant 0 : index
      %97 = vector.load %arg3[%c0_60, %c8, %c0_61, %c0_62] : memref<1x9x4x4xf32, #tpu.memory_space<vmem>>, vector<1x1x4x4xf32>
      %98 = vector.shape_cast %97 : vector<1x1x4x4xf32> to vector<4x4xf32>
      %cst_63 = arith.constant dense<0.000000e+00> : vector<4x256xf32>
      %99 = tpu.matmul %98, %96, %cst_63 {dimension_numbers = #tpu.dot_dimension_numbers<[1], [0], [0], [1], [0, 0, 1, 1], [], []>} : vector<4x4xf32>, vector<4x256xf32>, vector<4x256xf32> -> vector<4x256xf32>
      %100 = arith.addf %91, %99 : vector<4x256xf32>
      %cst_64 = arith.constant dense<0.000000e+00> : vector<4xf32>
      %101 = vector.multi_reduction <add>, %100, %cst_64 [1] : vector<4x256xf32> to vector<4xf32>
      %102 = vector.shape_cast %101 : vector<4xf32> to vector<4x1xf32>
      %103 = vector.broadcast %cst_12 : f32 to vector<4x1xf32>
      %104 = arith.mulf %102, %103 : vector<4x1xf32>
      %105 = vector.broadcast %104 : vector<4x1xf32> to vector<4x256xf32>
      %106 = arith.subf %100, %105 : vector<4x256xf32>
      %107 = arith.mulf %106, %106 : vector<4x256xf32>
      %cst_65 = arith.constant dense<0.000000e+00> : vector<4xf32>
      %108 = vector.multi_reduction <add>, %107, %cst_65 [1] : vector<4x256xf32> to vector<4xf32>
      %109 = vector.shape_cast %108 : vector<4xf32> to vector<4x1xf32>
      %110 = vector.broadcast %cst_12 : f32 to vector<4x1xf32>
      %111 = arith.mulf %109, %110 : vector<4x1xf32>
      %cst_66 = arith.constant 9.99999974E-6 : f32
      %112 = vector.broadcast %cst_66 : f32 to vector<4x1xf32>
      %113 = arith.addf %111, %112 : vector<4x1xf32>
      %114 = math.rsqrt %113 : vector<4x1xf32>
      %115 = vector.broadcast %114 : vector<4x1xf32> to vector<4x256xf32>
      %116 = arith.mulf %106, %115 : vector<4x256xf32>
      %cst_67 = arith.constant 0.000000e+00 : f32
      %117 = vector.broadcast %cst_67 : f32 to vector<4x256xf32>
      %118 = arith.maximumf %116, %117 : vector<4x256xf32>
      %c0_68 = arith.constant 0 : index
      %c0_69 = arith.constant 0 : index
      %c0_70 = arith.constant 0 : index
      %c0_71 = arith.constant 0 : index
      %119 = vector.load %arg4[%c0_68, %c0_69, %c0_70, %c0_71] : memref<1x1x4x256xf32, #tpu.memory_space<vmem>>, vector<1x1x4x256xf32>
      %120 = vector.shape_cast %119 : vector<1x1x4x256xf32> to vector<4x256xf32>
      %121 = vector.shape_cast %118 : vector<4x256xf32> to vector<1x1x4x256xf32>
      tpu.vector_store %arg4[%c0_68, %c0_69, %c0_70, %c0_71], %121 {strides = array<i32>} : memref<1x1x4x256xf32, #tpu.memory_space<vmem>>, vector<1x1x4x256xf32>,
    } else {
    }
    %c2_i32 = arith.constant 2 : i32
    %30 = arith.cmpi eq, %arg1, %c2_i32 : i32
    %31 = arith.extui %30 : i1 to i32
    %cst_14 = arith.constant 3.906250e-03 : f32
    %c0_i32_15 = arith.constant 0 : i32
    %32 = arith.cmpi ne, %31, %c0_i32_15 : i32
    scf.if %32 {
      %c4_i32 = arith.constant 4 : i32
      %33 = vector.broadcast %c4_i32 : i32 to vector<1x256xi32>
      %34 = arith.cmpi sge, %26, %33 : vector<1x256xi32>
      %c12_i32 = arith.constant 12 : i32
      %35 = vector.broadcast %c12_i32 : i32 to vector<1x256xi32>
      %36 = arith.cmpi slt, %26, %35 : vector<1x256xi32>
      %c0_16 = arith.constant 0 : index
      %c60 = arith.constant 60 : index
      %37 = vector.load %arg5[%c0_16, %c60] : memref<4x512xf32, #tpu.memory_space<vmem>>, vector<4x256xf32>
      %cst_17 = arith.constant 0.000000e+00 : f32
      %38 = vector.broadcast %cst_17 : f32 to vector<4x256xf32>
      %39 = vector.shape_cast %34 : vector<1x256xi1> to vector<1x256xi1>
      %40 = vector.broadcast %39 : vector<1x256xi1> to vector<4x256xi1>
      %41 = arith.select %40, %37, %38 : vector<4x256xi1>, vector<4x256xf32>
      %c0_18 = arith.constant 0 : index
      %c0_19 = arith.constant 0 : index
      %c0_20 = arith.constant 0 : index
      %c0_21 = arith.constant 0 : index
      %42 = vector.load %arg3[%c0_18, %c0_19, %c0_20, %c0_21] : memref<1x9x4x4xf32, #tpu.memory_space<vmem>>, vector<1x1x4x4xf32>
      %43 = vector.shape_cast %42 : vector<1x1x4x4xf32> to vector<4x4xf32>
      %cst_22 = arith.constant dense<0.000000e+00> : vector<4x256xf32>
      %44 = tpu.matmul %43, %41, %cst_22 {dimension_numbers = #tpu.dot_dimension_numbers<[1], [0], [0], [1], [0, 0, 1, 1], [], []>} : vector<4x4xf32>, vector<4x256xf32>, vector<4x256xf32> -> vector<4x256xf32>
      %45 = arith.addf %6, %44 : vector<4x256xf32>
      %c0_23 = arith.constant 0 : index
      %c64 = arith.constant 64 : index
      %46 = vector.load %arg5[%c0_23, %c64] : memref<4x512xf32, #tpu.memory_space<vmem>>, vector<4x256xf32>
      %c0_24 = arith.constant 0 : index
      %c1 = arith.constant 1 : index
      %c0_25 = arith.constant 0 : index
      %c0_26 = arith.constant 0 : index
      %47 = vector.load %arg3[%c0_24, %c1, %c0_25, %c0_26] : memref<1x9x4x4xf32, #tpu.memory_space<vmem>>, vector<1x1x4x4xf32>
      %48 = vector.shape_cast %47 : vector<1x1x4x4xf32> to vector<4x4xf32>
      %cst_27 = arith.constant dense<0.000000e+00> : vector<4x256xf32>
      %49 = tpu.matmul %48, %46, %cst_27 {dimension_numbers = #tpu.dot_dimension_numbers<[1], [0], [0], [1], [0, 0, 1, 1], [], []>} : vector<4x4xf32>, vector<4x256xf32>, vector<4x256xf32> -> vector<4x256xf32>
      %50 = arith.addf %45, %49 : vector<4x256xf32>
      %c0_28 = arith.constant 0 : index
      %c68 = arith.constant 68 : index
      %51 = vector.load %arg5[%c0_28, %c68] : memref<4x512xf32, #tpu.memory_space<vmem>>, vector<4x256xf32>
      %cst_29 = arith.constant 0.000000e+00 : f32
      %52 = vector.broadcast %cst_29 : f32 to vector<4x256xf32>
      %53 = vector.shape_cast %36 : vector<1x256xi1> to vector<1x256xi1>
      %54 = vector.broadcast %53 : vector<1x256xi1> to vector<4x256xi1>
      %55 = arith.select %54, %51, %52 : vector<4x256xi1>, vector<4x256xf32>
      %c0_30 = arith.constant 0 : index
      %c2 = arith.constant 2 : index
      %c0_31 = arith.constant 0 : index
      %c0_32 = arith.constant 0 : index
      %56 = vector.load %arg3[%c0_30, %c2, %c0_31, %c0_32] : memref<1x9x4x4xf32, #tpu.memory_space<vmem>>, vector<1x1x4x4xf32>
      %57 = vector.shape_cast %56 : vector<1x1x4x4xf32> to vector<4x4xf32>
      %cst_33 = arith.constant dense<0.000000e+00> : vector<4x256xf32>
      %58 = tpu.matmul %57, %55, %cst_33 {dimension_numbers = #tpu.dot_dimension_numbers<[1], [0], [0], [1], [0, 0, 1, 1], [], []>} : vector<4x4xf32>, vector<4x256xf32>, vector<4x256xf32> -> vector<4x256xf32>
      %59 = arith.addf %50, %58 : vector<4x256xf32>
      %c0_34 = arith.constant 0 : index
      %c124 = arith.constant 124 : index
      %60 = vector.load %arg5[%c0_34, %c124] : memref<4x512xf32, #tpu.memory_space<vmem>>, vector<4x256xf32>
      %cst_35 = arith.constant 0.000000e+00 : f32
      %61 = vector.broadcast %cst_35 : f32 to vector<4x256xf32>
      %62 = vector.shape_cast %34 : vector<1x256xi1> to vector<1x256xi1>
      %63 = vector.broadcast %62 : vector<1x256xi1> to vector<4x256xi1>
      %64 = arith.select %63, %60, %61 : vector<4x256xi1>, vector<4x256xf32>
      %c0_36 = arith.constant 0 : index
      %c3 = arith.constant 3 : index
      %c0_37 = arith.constant 0 : index
      %c0_38 = arith.constant 0 : index
      %65 = vector.load %arg3[%c0_36, %c3, %c0_37, %c0_38] : memref<1x9x4x4xf32, #tpu.memory_space<vmem>>, vector<1x1x4x4xf32>
      %66 = vector.shape_cast %65 : vector<1x1x4x4xf32> to vector<4x4xf32>
      %cst_39 = arith.constant dense<0.000000e+00> : vector<4x256xf32>
      %67 = tpu.matmul %66, %64, %cst_39 {dimension_numbers = #tpu.dot_dimension_numbers<[1], [0], [0], [1], [0, 0, 1, 1], [], []>} : vector<4x4xf32>, vector<4x256xf32>, vector<4x256xf32> -> vector<4x256xf32>
      %68 = arith.addf %59, %67 : vector<4x256xf32>
      %c0_40 = arith.constant 0 : index
      %c132 = arith.constant 132 : index
      %69 = vector.load %arg5[%c0_40, %c132] : memref<4x512xf32, #tpu.memory_space<vmem>>, vector<4x256xf32>
      %cst_41 = arith.constant 0.000000e+00 : f32
      %70 = vector.broadcast %cst_41 : f32 to vector<4x256xf32>
      %71 = vector.shape_cast %36 : vector<1x256xi1> to vector<1x256xi1>
      %72 = vector.broadcast %71 : vector<1x256xi1> to vector<4x256xi1>
      %73 = arith.select %72, %69, %70 : vector<4x256xi1>, vector<4x256xf32>
      %c0_42 = arith.constant 0 : index
      %c5 = arith.constant 5 : index
      %c0_43 = arith.constant 0 : index
      %c0_44 = arith.constant 0 : index
      %74 = vector.load %arg3[%c0_42, %c5, %c0_43, %c0_44] : memref<1x9x4x4xf32, #tpu.memory_space<vmem>>, vector<1x1x4x4xf32>
      %75 = vector.shape_cast %74 : vector<1x1x4x4xf32> to vector<4x4xf32>
      %cst_45 = arith.constant dense<0.000000e+00> : vector<4x256xf32>
      %76 = tpu.matmul %75, %73, %cst_45 {dimension_numbers = #tpu.dot_dimension_numbers<[1], [0], [0], [1], [0, 0, 1, 1], [], []>} : vector<4x4xf32>, vector<4x256xf32>, vector<4x256xf32> -> vector<4x256xf32>
      %77 = arith.addf %68, %76 : vector<4x256xf32>
      %c0_46 = arith.constant 0 : index
      %c188 = arith.constant 188 : index
      %78 = vector.load %arg5[%c0_46, %c188] : memref<4x512xf32, #tpu.memory_space<vmem>>, vector<4x256xf32>
      %cst_47 = arith.constant 0.000000e+00 : f32
      %79 = vector.broadcast %cst_47 : f32 to vector<4x256xf32>
      %80 = vector.shape_cast %34 : vector<1x256xi1> to vector<1x256xi1>
      %81 = vector.broadcast %80 : vector<1x256xi1> to vector<4x256xi1>
      %82 = arith.select %81, %78, %79 : vector<4x256xi1>, vector<4x256xf32>
      %c0_48 = arith.constant 0 : index
      %c6 = arith.constant 6 : index
      %c0_49 = arith.constant 0 : index
      %c0_50 = arith.constant 0 : index
      %83 = vector.load %arg3[%c0_48, %c6, %c0_49, %c0_50] : memref<1x9x4x4xf32, #tpu.memory_space<vmem>>, vector<1x1x4x4xf32>
      %84 = vector.shape_cast %83 : vector<1x1x4x4xf32> to vector<4x4xf32>
      %cst_51 = arith.constant dense<0.000000e+00> : vector<4x256xf32>
      %85 = tpu.matmul %84, %82, %cst_51 {dimension_numbers = #tpu.dot_dimension_numbers<[1], [0], [0], [1], [0, 0, 1, 1], [], []>} : vector<4x4xf32>, vector<4x256xf32>, vector<4x256xf32> -> vector<4x256xf32>
      %86 = arith.addf %77, %85 : vector<4x256xf32>
      %c0_52 = arith.constant 0 : index
      %c192 = arith.constant 192 : index
      %87 = vector.load %arg5[%c0_52, %c192] : memref<4x512xf32, #tpu.memory_space<vmem>>, vector<4x256xf32>
      %c0_53 = arith.constant 0 : index
      %c7 = arith.constant 7 : index
      %c0_54 = arith.constant 0 : index
      %c0_55 = arith.constant 0 : index
      %88 = vector.load %arg3[%c0_53, %c7, %c0_54, %c0_55] : memref<1x9x4x4xf32, #tpu.memory_space<vmem>>, vector<1x1x4x4xf32>
      %89 = vector.shape_cast %88 : vector<1x1x4x4xf32> to vector<4x4xf32>
      %cst_56 = arith.constant dense<0.000000e+00> : vector<4x256xf32>
      %90 = tpu.matmul %89, %87, %cst_56 {dimension_numbers = #tpu.dot_dimension_numbers<[1], [0], [0], [1], [0, 0, 1, 1], [], []>} : vector<4x4xf32>, vector<4x256xf32>, vector<4x256xf32> -> vector<4x256xf32>
      %91 = arith.addf %86, %90 : vector<4x256xf32>
      %c0_57 = arith.constant 0 : index
      %c196 = arith.constant 196 : index
      %92 = vector.load %arg5[%c0_57, %c196] : memref<4x512xf32, #tpu.memory_space<vmem>>, vector<4x256xf32>
      %cst_58 = arith.constant 0.000000e+00 : f32
      %93 = vector.broadcast %cst_58 : f32 to vector<4x256xf32>
      %94 = vector.shape_cast %36 : vector<1x256xi1> to vector<1x256xi1>
      %95 = vector.broadcast %94 : vector<1x256xi1> to vector<4x256xi1>
      %96 = arith.select %95, %92, %93 : vector<4x256xi1>, vector<4x256xf32>
      %c0_59 = arith.constant 0 : index
      %c8 = arith.constant 8 : index
      %c0_60 = arith.constant 0 : index
      %c0_61 = arith.constant 0 : index
      %97 = vector.load %arg3[%c0_59, %c8, %c0_60, %c0_61] : memref<1x9x4x4xf32, #tpu.memory_space<vmem>>, vector<1x1x4x4xf32>
      %98 = vector.shape_cast %97 : vector<1x1x4x4xf32> to vector<4x4xf32>
      %cst_62 = arith.constant dense<0.000000e+00> : vector<4x256xf32>
      %99 = tpu.matmul %98, %96, %cst_62 {dimension_numbers = #tpu.dot_dimension_numbers<[1], [0], [0], [1], [0, 0, 1, 1], [], []>} : vector<4x4xf32>, vector<4x256xf32>, vector<4x256xf32> -> vector<4x256xf32>
      %100 = arith.addf %91, %99 : vector<4x256xf32>
      %cst_63 = arith.constant dense<0.000000e+00> : vector<4xf32>
      %101 = vector.multi_reduction <add>, %100, %cst_63 [1] : vector<4x256xf32> to vector<4xf32>
      %102 = vector.shape_cast %101 : vector<4xf32> to vector<4x1xf32>
      %103 = vector.broadcast %cst_14 : f32 to vector<4x1xf32>
      %104 = arith.mulf %102, %103 : vector<4x1xf32>
      %105 = vector.broadcast %104 : vector<4x1xf32> to vector<4x256xf32>
      %106 = arith.subf %100, %105 : vector<4x256xf32>
      %107 = arith.mulf %106, %106 : vector<4x256xf32>
      %cst_64 = arith.constant dense<0.000000e+00> : vector<4xf32>
      %108 = vector.multi_reduction <add>, %107, %cst_64 [1] : vector<4x256xf32> to vector<4xf32>
      %109 = vector.shape_cast %108 : vector<4xf32> to vector<4x1xf32>
      %110 = vector.broadcast %cst_14 : f32 to vector<4x1xf32>
      %111 = arith.mulf %109, %110 : vector<4x1xf32>
      %cst_65 = arith.constant 9.99999974E-6 : f32
      %112 = vector.broadcast %cst_65 : f32 to vector<4x1xf32>
      %113 = arith.addf %111, %112 : vector<4x1xf32>
      %114 = math.rsqrt %113 : vector<4x1xf32>
      %115 = vector.broadcast %114 : vector<4x1xf32> to vector<4x256xf32>
      %116 = arith.mulf %106, %115 : vector<4x256xf32>
      %cst_66 = arith.constant 0.000000e+00 : f32
      %117 = vector.broadcast %cst_66 : f32 to vector<4x256xf32>
      %118 = arith.maximumf %116, %117 : vector<4x256xf32>
      %c0_67 = arith.constant 0 : index
      %c0_68 = arith.constant 0 : index
      %c0_69 = arith.constant 0 : index
      %c0_70 = arith.constant 0 : index
      %119 = vector.load %arg4[%c0_67, %c0_68, %c0_69, %c0_70] : memref<1x1x4x256xf32, #tpu.memory_space<vmem>>, vector<1x1x4x256xf32>
      %120 = vector.shape_cast %119 : vector<1x1x4x256xf32> to vector<4x256xf32>
      %121 = vector.shape_cast %118 : vector<4x256xf32> to vector<1x1x4x256xf32>
      tpu.vector_store %arg4[%c0_67, %c0_68, %c0_69, %c0_70], %121 {strides = array<i32>} : memref<1x1x4x256xf32, #tpu.memory_space<vmem>>, vector<1x1x4x256xf32>,
    } else {
    }
    return
  }
  func.func @transform_0(%arg0: i32, %arg1: i32) -> (i32, i32, i32) {
    %c0_i32 = arith.constant 0 : i32
    %c0_i32_0 = arith.constant 0 : i32
    %c0_i32_1 = arith.constant 0 : i32
    return %arg0, %c0_i32, %c0_i32_0 : i32, i32, i32
  }
  func.func @transform_1(%arg0: i32, %arg1: i32) -> (i32, i32, i32, i32) {
    %c0_i32 = arith.constant 0 : i32
    %c0_i32_0 = arith.constant 0 : i32
    %c0_i32_1 = arith.constant 0 : i32
    %c0_i32_2 = arith.constant 0 : i32
    return %arg1, %c0_i32, %c0_i32_0, %c0_i32_1 : i32, i32, i32, i32
  }
  func.func @transform_2(%arg0: i32, %arg1: i32) -> (i32, i32, i32, i32) {
    %c0_i32 = arith.constant 0 : i32
    %c0_i32_0 = arith.constant 0 : i32
    %c0_i32_1 = arith.constant 0 : i32
    return %arg0, %arg1, %c0_i32, %c0_i32_0 : i32, i32, i32, i32
  }
}

</mosaic_0001>

<llo_original>
// kernel: tpu_custom_call.1
$region0: #{tpu_custom_call.1}
  #allocation0 [shape = 'u32[]', space=smem, size = 0x4, offset = 0x4, fixed_abs, tag = 'smem constant byte address 0x4 - core index']
  #allocation1 [shape = 'u32[72,128]{1,0:T(1,128)}', space=vmem, size = 0x9000, scoped, tag = 'internal scratch']
  #allocation2 [shape = 'f32[4,512]{1,0:T(4,128)}', space=vmem, size = 0x2000, scoped, tag = 'scratch operand']
  %s0 = inlined_call_operand.vmem [shape: f32[2,4,256], index: 0, kind: input, shape index: {}]
  %s1 = inlined_call_operand.vmem [shape: f32[3,9,4,4], index: 1, kind: input, shape index: {}]
  %s2 = inlined_call_operand.hbm [shape: f32[2,3,4,256], index: 2, kind: output, shape index: {}]
  %s3 = sld [smem:[#allocation0]]
  $region57: #{tpu_custom_call.1} parent=0
    _
  %s5 = ssub.s32 1, %s3
  %s6 = scalar_select 0, %s5, %s3
  $region1: #{tpu_custom_call.1} parent=0
    #allocation3 [shape = 'u8[8192]{0}', space=vmem, size = 0x2000, scoped, tag = 'output window, operand 0']
    #allocation4 [shape = 's32[2]{0}', space=sflag, size = 0x8, scoped, tag = 'scoped memory for tpu_custom_call.1']
    %7 = vsyncpa [#allocation4], 0
    %s8 = scalar_lea.sflag [#allocation4], 1
    %9 = vsyncpa %s8, 0
    loop: start=0, step=1, limit=8
    $region2: #{tpu_custom_call.1} parent=1 // loop_pre_header
      _
    $region3: #{tpu_custom_call.1} parent=1 // loop_header
      %s11 = sphi 0, %s15
      %p12 = scmp.ge.s32.totalorder %s11, 8
      %s18 = sphi 0, %s30
      %s19 = sphi 0, %s26
      %s20 = sphi 0, %s18
      %s21 = sphi 0, %s19
      %s22 = sphi 0, %s20
      %s23 = sphi 0, %s21
      %s33 = sphi 0, %s35
      %s36 = sphi 0, %s33
      %s37 = sphi 0, %s36
      %s53 = sphi 0, %s37
      %s59 = sphi 0, %s61
      %s62 = sphi 0, %s59
      %s63 = sphi 0, %s62
      %s79 = sphi 0, %s63
      %s87 = sphi 0, %s89
      %s90 = sphi 0, %s87
      %s91 = sphi 0, %s90
      %s107 = sphi 0, %s91
    $region4: #{tpu_custom_call.1} parent=1 // loop_header_branch
      %14 = sbr.rel (%p12) target = $region8
    $region5: #{tpu_custom_call.1} parent=1 // loop_body
      %s16 = ssub.s32 %s11, 1
      %s17 = ssub.s32 %s11, 2
      %s24 = sadd.s32 1, %s19
      %p25 = scmp.ge.s32.totalorder %s24, 3
      %s26 = scalar_select %p25, 0, %s24
      %s27 = sadd.s32 1, %s18
      %s28 = scalar_select %p25, %s27, %s18
      %p29 = scmp.ge.s32.totalorder %s28, 2
      %s30 = scalar_select %p29, 0, %s28
      %s31 = ssub.s32 %s18, %s30
      %p32 = scmp.eq.s32.totalorder %s31, 0
      %s34 = sadd.s32 %s33, 1
      %s35 = scalar_select %p32, %s33, %s34
      %p38 = pneg %p32
      %p39 = scmp.eq.s32.totalorder %s11, 5
      %p40 = por %p38, %p39
      %p41 = scmp.ne.s32.totalorder %s33, %s36
      %p42 = scmp.eq.s32.totalorder %s11, 0
      %p43 = por %p41, %p42
      %p44 = scmp.ne.s32.totalorder %s33, %s36
      %p45 = scmp.eq.s32.totalorder %s16, 5
      %p46 = por %p44, %p45
      %p47 = scmp.ne.s32.totalorder %s36, %s37
      %p48 = scmp.eq.s32.totalorder %s16, 0
      %p49 = por %p47, %p48
      %p50 = scmp.ne.s32.totalorder %s36, %s37
      %p51 = scmp.eq.s32.totalorder %s17, 5
      %p52 = por %p50, %p51
      %p54 = scmp.ne.s32.totalorder %s37, %s53
      %p55 = scmp.eq.s32.totalorder %s17, 0
      %p56 = por %p54, %p55
      %s57 = ssub.s32 %s19, %s26
      %p58 = scmp.eq.s32.totalorder %s57, 0
      %s60 = sadd.s32 %s59, 1
      %s61 = scalar_select %p58, %s59, %s60
      %p64 = pneg %p58
      %p65 = scmp.eq.s32.totalorder %s11, 5
      %p66 = por %p64, %p65
      %p67 = scmp.ne.s32.totalorder %s59, %s62
      %p68 = scmp.eq.s32.totalorder %s11, 0
      %p69 = por %p67, %p68
      %p70 = scmp.ne.s32.totalorder %s59, %s62
      %p71 = scmp.eq.s32.totalorder %s16, 5
      %p72 = por %p70, %p71
      %p73 = scmp.ne.s32.totalorder %s62, %s63
      %p74 = scmp.eq.s32.totalorder %s16, 0
      %p75 = por %p73, %p74
      %p76 = scmp.ne.s32.totalorder %s62, %s63
      %p77 = scmp.eq.s32.totalorder %s17, 5
      %p78 = por %p76, %p77
      %p80 = scmp.ne.s32.totalorder %s63, %s79
      %p81 = scmp.eq.s32.totalorder %s17, 0
      %p82 = por %p80, %p81
      %s83 = ssub.s32 %s18, %s30
      %s84 = ssub.s32 %s19, %s26
      %s85 = sor.u32 %s83, %s84
      %p86 = scmp.eq.s32.totalorder %s85, 0
      %s88 = sadd.s32 %s87, 1
      %s89 = scalar_select %p86, %s87, %s88
      %p92 = pneg %p86
      %p93 = scmp.eq.s32.totalorder %s11, 5
      %p94 = por %p92, %p93
      %p95 = scmp.ne.s32.totalorder %s87, %s90
      %p96 = scmp.eq.s32.totalorder %s11, 0
      %p97 = por %p95, %p96
      %p98 = scmp.ne.s32.totalorder %s87, %s90
      %p99 = scmp.eq.s32.totalorder %s16, 5
      %p100 = por %p98, %p99
      %p101 = scmp.ne.s32.totalorder %s90, %s91
      %p102 = scmp.eq.s32.totalorder %s16, 0
      %p103 = por %p101, %p102
      %p104 = scmp.ne.s32.totalorder %s90, %s91
      %p105 = scmp.eq.s32.totalorder %s17, 5
      %p106 = por %p104, %p105
      %p108 = scmp.ne.s32.totalorder %s91, %s107
      %p109 = scmp.eq.s32.totalorder %s17, 0
      %p110 = por %p108, %p109
      %p111 = scmp.le.s32.totalorder 1, %s11
      %p112 = scmp.lt.s32.totalorder %s11, 7
      %p113 = pnand %p111, %p112
      %p114 = pneg %p113
      // Predicated region
      $region9: #{tpu_custom_call.1} parent=5 // pred_check
        _
      $region10: #{tpu_custom_call.1} parent=5 // pred_check_branch
        %116 = sbr.rel (%p113) target = $region12
      $region11: #{tpu_custom_call.1} parent=5 // pred_region
        %s117 = ssub.s32 %s11, 1
      $region12: #{tpu_custom_call.1} parent=5 // pred_fallthru
        _
      %p118 = scmp.lt.s32.totalorder %s11, 6
      // Predicated region
      $region13: #{tpu_custom_call.1} parent=5 // pred_check
        %p119 = pneg %p118
      $region14: #{tpu_custom_call.1} parent=5 // pred_check_branch
        %121 = sbr.rel (%p119) target = $region16
      $region15: #{tpu_custom_call.1} parent=5 // pred_region
        // Predicated region
        $region17: #{tpu_custom_call.1} parent=15 // pred_check
          %p122 = pneg %p43
        $region18: #{tpu_custom_call.1} parent=15 // pred_check_branch
          %124 = sbr.rel (%p122) target = $region20
        $region19: #{tpu_custom_call.1} parent=15 // pred_region
          %p125 = scmp.lt.s32.totalorder %s18, 1
          %s126 = scalar_select %p125, %s18, 1
          %s127 = smul.addr %s126, 2
          %s128 = smul.addr %s127, 4
          %s129 = scalar_lea.vmem %s0, %s128
        $region20: #{tpu_custom_call.1} parent=15 // pred_fallthru
          _
        // Predicated region
        $region21: #{tpu_custom_call.1} parent=15 // pred_check
          %p130 = pneg %p69
        $region22: #{tpu_custom_call.1} parent=15 // pred_check_branch
          %132 = sbr.rel (%p130) target = $region24
        $region23: #{tpu_custom_call.1} parent=15 // pred_region
          %p133 = scmp.lt.s32.totalorder %s19, 2
          %s134 = scalar_select %p133, %s19, 2
          %s135 = smul.addr %s134, 9
          %s136 = smul.addr %s135, 4
          %s137 = scalar_lea.vmem %s1, %s136
        $region24: #{tpu_custom_call.1} parent=15 // pred_fallthru
          _
      $region16: #{tpu_custom_call.1} parent=5 // pred_fallthru
        _
      %p138 = scmp.le.s32.totalorder 1, %s11
      %p139 = scmp.lt.s32.totalorder %s11, 7
      %p140 = pnand %p138, %p139
      %p141 = pneg %p140
      // Predicated region
      $region25: #{tpu_custom_call.1} parent=5 // pred_check
        _
      $region26: #{tpu_custom_call.1} parent=5 // pred_check_branch
        %143 = sbr.rel (%p140) target = $region28
      $region27: #{tpu_custom_call.1} parent=5 // pred_region
        %s144 = ssub.s32 %s11, 1
        %p145 = scmp.lt.s32.totalorder %s20, 1
        %s146 = scalar_select %p145, %s20, 1
        %s147 = smul.addr %s146, 2
        %s148 = smul.addr %s147, 4
        %s149 = scalar_lea.vmem %s0, %s148
        %p150 = pneg %p49
        %p151 = pneg %p46
        %p152 = scmp.lt.s32.totalorder %s21, 2
        %s153 = scalar_select %p152, %s21, 2
        %s154 = smul.addr %s153, 9
        %s155 = smul.addr %s154, 4
        %s156 = scalar_lea.vmem %s1, %s155
        %p157 = pneg %p75
        %p158 = pneg %p72
        %p159 = pneg %p103
        %p160 = pneg %p100
        %s161 = sand.u32 %s90, 1
        %s162 = scalar_lea.sflag [#allocation4], %s161
        %s163 = sand.u32 %s90, 1
        %s164 = smul.addr %s163, 8
        %s165 = scalar_lea.vmem [#allocation3], %s164
        %p166 = scmp.lt.s32.totalorder %s20, 1
        %s167 = scalar_select %p166, %s20, 1
        %s168 = smul.addr %s167, 2
        %s169 = smul.addr %s168, 4
        %s170 = scalar_lea.vmem %s0, %s169
        %p171 = scmp.lt.s32.totalorder %s21, 2
        %s172 = scalar_select %p171, %s21, 2
        %s173 = smul.addr %s172, 9
        %s174 = smul.addr %s173, 4
        %s175 = scalar_lea.vmem %s1, %s174
        %p176 = scmp.eq.s32.totalorder %s21, 0
        // Predicated region
        $region29: #{tpu_custom_call.1} parent=27 // pred_check
          %p177 = pneg %p176
        $region30: #{tpu_custom_call.1} parent=27 // pred_check_branch
          %179 = sbr.rel (%p177) target = $region32
        $region31: #{tpu_custom_call.1} parent=27 // pred_region
          %180 = vst [vmem:[#allocation2] sm:$0xff] 0.0
          %181 = vst [vmem:[#allocation2 + $0x8] sm:$0xff] 0.0
          %v182 = vld [vmem:[%s170] sm:$0xff]
          %183 = vst [vmem:[#allocation2 + $0x4] sm:$0xff] %v182
        $region32: #{tpu_custom_call.1} parent=27 // pred_fallthru
          _
        %v184 = vld [vmem:[#allocation2 + $0x4] sm:$0xff]
        %s185 = scalar_lea.vmem %s175, 16
        %v186 = vld [vmem:[%s185] sm:$0xf]
        %188 = vst [vmem:[#allocation1] ss:$2 sm:$0xff] %v184
        %v189 = vld.sshfl [vmem:[#allocation1] sm:$0xff pattern:$0x75316420]
        %v190 = vld.sshfl [vmem:[#allocation1 + $0x8] sm:$0xff pattern:$0x75316420]
        %vm191 = vcmask 31744
        %v193 = vsel %vm191, %v186, 0
        %vm195 = vcmask 1043456
        %v196 = vsel %vm195, %v189, 0
        %v198 = vsel %vm195, %v190, 0
        %200 = vmatpush.msra.mxu0 0.0
        %201 = vmatpush.msra.mxu0 0.0
        %202 = vmatpush.msra.mxu0 0.0
        %203 = vmatpush.msra.mxu0 0.0
        %204 = vmatpush.msra.mxu0 0.0
        %205 = vmatpush.msra.mxu0 0.0
        %206 = vmatpush.msra.mxu0 0.0
        %207 = vmatpush.msra.mxu0 0.0
        %208 = vmatpush.msra.mxu0 0.0
        %209 = vmatpush.msra.mxu0 0.0
        %210 = vmatpush.msra.mxu0 0.0
        %211 = vmatpush.msra.mxu0 0.0
        %212 = vmatpush.msra.mxu0 0.0
        %213 = vmatpush.msra.mxu0 0.0
        %214 = vmatpush.msra.mxu0 0.0
        %215 = vmatpush.msra.mxu0 %v196
        %216 = vmatmul.f32.gmra.mxu0 %v193
        %v217 = vpop.f32.mrf.mxu0
        %v218 = vadd.f32 0.0, %v217
        %219 = vdwg.mxu0
        %220 = vmatpush.msra.mxu0 0.0
        %221 = vmatpush.msra.mxu0 0.0
        %222 = vmatpush.msra.mxu0 0.0
        %223 = vmatpush.msra.mxu0 0.0
        %224 = vmatpush.msra.mxu0 0.0
        %225 = vmatpush.msra.mxu0 0.0
        %226 = vmatpush.msra.mxu0 0.0
        %227 = vmatpush.msra.mxu0 0.0
        %228 = vmatpush.msra.mxu0 0.0
        %229 = vmatpush.msra.mxu0 0.0
        %230 = vmatpush.msra.mxu0 0.0
        %231 = vmatpush.msra.mxu0 0.0
        %232 = vmatpush.msra.mxu0 0.0
        %233 = vmatpush.msra.mxu0 0.0
        %234 = vmatpush.msra.mxu0 0.0
        %235 = vmatpush.msra.mxu0 %v198
        %236 = vmatmul.f32.gmra.mxu0 %v193
        %v237 = vpop.f32.mrf.mxu0
        %v238 = vadd.f32 0.0, %v237
        %239 = vdwg.mxu0
        // Predicated region
        $region33: #{tpu_custom_call.1} parent=27 // pred_check
          %p240 = pneg %p176
        $region34: #{tpu_custom_call.1} parent=27 // pred_check_branch
          %242 = sbr.rel (%p240) target = $region36
        $region35: #{tpu_custom_call.1} parent=27 // pred_region
          %v243 = vsel %vm195, %v218, 0.0
          %v244 = vsel %vm195, %v238, 0.0
          %v245 = vadd.f32 %v243, %v244
          %246 = vadd.xlane.f32.xlu0 %v245
          %v247 = vpop.xlane.xlu0 %246
          %v248 = vmul.f32 %v247, 0.00390625
          %v249 = vsub.f32 %v218, %v248
          %v250 = vsub.f32 %v238, %v248
          %v251 = vmul.f32 %v249, %v249
          %v252 = vmul.f32 %v250, %v250
          %v253 = vsel %vm195, %v251, 0.0
          %v254 = vsel %vm195, %v252, 0.0
          %v255 = vadd.f32 %v253, %v254
          %256 = vadd.xlane.f32.xlu0 %v255
          %v257 = vpop.xlane.xlu0 %256
          %v258 = vmul.f32 %v257, 0.00390625
          %v259 = vadd.f32 %v258, 1e-05
          %v260 = vrsqrt.pop %v259
          %v261 = vmul.f32 %v260, %v259
          %v262 = vmul.f32 %v261, %v260
          %v263 = vmul.f32 0.5, %v262
          %v264 = vsub.f32 1.5, %v263
          %v265 = vmul.f32 %v260, %v264
          %vm266 = vweird.f32 %v259
          %vm267 = vweird.f32 %v260
          %vm268 = vmor %vm266, %vm267
          %v269 = vsel %vm268, %v260, %v265
          %v270 = vmul.f32 %v249, %v269
          %v271 = vmul.f32 %v250, %v269
          %v272 = vmax.f32 %v270, 0.0
          %v273 = vmax.f32 %v271, 0.0
          %v276 = vrot.slane %v273, 4
          %v277 = vsel %vm195, %v272, %v276
          %279 = vst [vmem:[%s165] sm:$0xff] %v277
        $region36: #{tpu_custom_call.1} parent=27 // pred_fallthru
          _
        %v280 = vlaneseq
        %v281 = vand.u32 %v280, 127
        %v282 = vadd.s32 %v281, 128
        %vm283 = vcmp.lt.s32.totalorder %v281, 0
        %v284 = vsub.s32 0, %v281
        %v285 = vsel %vm283, %v284, %v281
        %v286 = vshrl.u32 %v285, 4
        %v287 = vand.u32 %v285, 15
        %v288 = vsub.s32 0, %v287
        %v289 = vsel %vm283, %v288, %v287
        %vm290 = vcmp.lt.s32.totalorder %v282, 0
        %v291 = vsub.s32 0, %v282
        %v292 = vsel %vm290, %v291, %v282
        %v293 = vshrl.u32 %v292, 4
        %v294 = vand.u32 %v292, 15
        %v295 = vsub.s32 0, %v294
        %v296 = vsel %vm290, %v295, %v294
        %vm297 = vcmp.ne.s32.totalorder %v289, 0
        %vm298 = vcmp.ne.s32.totalorder %v296, 0
        %vm299 = vcmp.lt.s32.totalorder %v289, 0
        %vm300 = vcmp.lt.s32.totalorder %v296, 0
        %vm301 = vmand %vm299, %vm297
        %vm302 = vmand %vm300, %vm298
        %v303 = vadd.s32 %v289, 16
        %v304 = vadd.s32 %v296, 16
        %v305 = vsel %vm301, %v303, %v289
        %v306 = vsel %vm302, %v304, %v296
        %p307 = scmp.eq.s32.totalorder %s21, 1
        // Predicated region
        $region37: #{tpu_custom_call.1} parent=27 // pred_check
          %p308 = pneg %p307
        $region38: #{tpu_custom_call.1} parent=27 // pred_check_branch
          %310 = sbr.rel (%p308) target = $region40
        $region39: #{tpu_custom_call.1} parent=27 // pred_region
          %vm311 = vcmp.ge.s32.totalorder %v305, 2
          %vm312 = vcmp.ge.s32.totalorder %v306, 2
          %vm313 = vcmp.lt.s32.totalorder %v305, 14
          %vm314 = vcmp.lt.s32.totalorder %v306, 14
          %v315 = vld [vmem:[#allocation2] sm:$0xff]
          %v316 = vld [vmem:[#allocation2 + $0x8] sm:$0xf]
          %v317 = vsel %vm311, 1, 0
          %v318 = vsel %vm312, 1, 0
          %vm319 = vcmp.eq.s32.totalorder %v317, 1
          %vm320 = vcmp.eq.s32.totalorder %v318, 1
          %323 = vst [vmem:[#allocation1] ss:$2 sm:$0xff] %v315
          %s324 = scalar_lea.vmem [#allocation1], 16
          %325 = vst [vmem:[%s324] ss:$2 sm:$0xff] %v316
          %v326 = vld.sshfl [vmem:[#allocation1] sm:$0xff pattern:$0x75316420]
          %v327 = vld.sshfl [vmem:[#allocation1 + $0x8] sm:$0xff pattern:$0x75316420]
          %v328 = vld.sshfl [vmem:[#allocation1 + $0x10] sm:$0xff pattern:$0x75316420]
          %329 = vrot.lane.b32.xlu0 %v326, 34
          %v330 = vpop.permute.xlu0 %329
          %331 = vrot.lane.b32.xlu0 %v327, 34
          %v332 = vpop.permute.xlu0 %331
          %333 = vrot.lane.b32.xlu0 %v328, 34
          %v334 = vpop.permute.xlu0 %333
          %vm335 = vcmask 277504
          %v336 = vsel %vm335, %v330, %v332
          %v337 = vsel %vm335, %v332, %v334
          %v340 = vsel %vm319, %v336, 0.0
          %v341 = vsel %vm320, %v337, 0.0
          %v342 = vld [vmem:[%s175] sm:$0xf]
          %v344 = vsel %vm191, %v342, 0
          %v347 = vsel %vm195, %v340, 0
          %v350 = vsel %vm195, %v341, 0
          %352 = vmatpush.msra.mxu0 0.0
          %353 = vmatpush.msra.mxu0 0.0
          %354 = vmatpush.msra.mxu0 0.0
          %355 = vmatpush.msra.mxu0 0.0
          %356 = vmatpush.msra.mxu0 0.0
          %357 = vmatpush.msra.mxu0 0.0
          %358 = vmatpush.msra.mxu0 0.0
          %359 = vmatpush.msra.mxu0 0.0
          %360 = vmatpush.msra.mxu0 0.0
          %361 = vmatpush.msra.mxu0 0.0
          %362 = vmatpush.msra.mxu0 0.0
          %363 = vmatpush.msra.mxu0 0.0
          %364 = vmatpush.msra.mxu0 0.0
          %365 = vmatpush.msra.mxu0 0.0
          %366 = vmatpush.msra.mxu0 0.0
          %367 = vmatpush.msra.mxu0 %v347
          %368 = vmatmul.f32.gmra.mxu0 %v344
          %v369 = vpop.f32.mrf.mxu0
          %v370 = vadd.f32 0.0, %v369
          %371 = vdwg.mxu0
          %372 = vmatpush.msra.mxu0 0.0
          %373 = vmatpush.msra.mxu0 0.0
          %374 = vmatpush.msra.mxu0 0.0
          %375 = vmatpush.msra.mxu0 0.0
          %376 = vmatpush.msra.mxu0 0.0
          %377 = vmatpush.msra.mxu0 0.0
          %378 = vmatpush.msra.mxu0 0.0
          %379 = vmatpush.msra.mxu0 0.0
          %380 = vmatpush.msra.mxu0 0.0
          %381 = vmatpush.msra.mxu0 0.0
          %382 = vmatpush.msra.mxu0 0.0
          %383 = vmatpush.msra.mxu0 0.0
          %384 = vmatpush.msra.mxu0 0.0
          %385 = vmatpush.msra.mxu0 0.0
          %386 = vmatpush.msra.mxu0 0.0
          %387 = vmatpush.msra.mxu0 %v350
          %388 = vmatmul.f32.gmra.mxu0 %v344
          %v389 = vpop.f32.mrf.mxu0
          %v390 = vadd.f32 0.0, %v389
          %391 = vdwg.mxu0
          %v392 = vadd.f32 %v218, %v370
          %v393 = vadd.f32 %v238, %v390
          %v394 = vld [vmem:[#allocation2] sm:$0xff]
          %v395 = vld [vmem:[#allocation2 + $0x8] sm:$0xf]
          %s396 = scalar_lea.vmem %s175, 4
          %v397 = vld [vmem:[%s396] sm:$0xf]
          %400 = vst [vmem:[#allocation1] ss:$2 sm:$0xff] %v394
          %s401 = scalar_lea.vmem [#allocation1], 16
          %402 = vst [vmem:[%s401] ss:$2 sm:$0xff] %v395
          %v403 = vld.sshfl [vmem:[#allocation1] sm:$0xff pattern:$0x75316420]
          %v404 = vld.sshfl [vmem:[#allocation1 + $0x8] sm:$0xff pattern:$0x75316420]
          %v405 = vld.sshfl [vmem:[#allocation1 + $0x10] sm:$0xff pattern:$0x75316420]
          %406 = vrot.lane.b32.xlu0 %v403, 32
          %v407 = vpop.permute.xlu0 %406
          %408 = vrot.lane.b32.xlu0 %v404, 32
          %v409 = vpop.permute.xlu0 %408
          %410 = vrot.lane.b32.xlu0 %v405, 32
          %v411 = vpop.permute.xlu0 %410
          %vm412 = vcmask 261120
          %v413 = vsel %vm412, %v407, %v409
          %v414 = vsel %vm412, %v409, %v411
          %v416 = vsel %vm191, %v397, 0
          %v418 = vsel %vm195, %v413, 0
          %v420 = vsel %vm195, %v414, 0
          %422 = vmatpush.msra.mxu0 0.0
          %423 = vmatpush.msra.mxu0 0.0
          %424 = vmatpush.msra.mxu0 0.0
          %425 = vmatpush.msra.mxu0 0.0
          %426 = vmatpush.msra.mxu0 0.0
          %427 = vmatpush.msra.mxu0 0.0
          %428 = vmatpush.msra.mxu0 0.0
          %429 = vmatpush.msra.mxu0 0.0
          %430 = vmatpush.msra.mxu0 0.0
          %431 = vmatpush.msra.mxu0 0.0
          %432 = vmatpush.msra.mxu0 0.0
          %433 = vmatpush.msra.mxu0 0.0
          %434 = vmatpush.msra.mxu0 0.0
          %435 = vmatpush.msra.mxu0 0.0
          %436 = vmatpush.msra.mxu0 0.0
          %437 = vmatpush.msra.mxu0 %v418
          %438 = vmatmul.f32.gmra.mxu0 %v416
          %v439 = vpop.f32.mrf.mxu0
          %v440 = vadd.f32 0.0, %v439
          %441 = vdwg.mxu0
          %442 = vmatpush.msra.mxu0 0.0
          %443 = vmatpush.msra.mxu0 0.0
          %444 = vmatpush.msra.mxu0 0.0
          %445 = vmatpush.msra.mxu0 0.0
          %446 = vmatpush.msra.mxu0 0.0
          %447 = vmatpush.msra.mxu0 0.0
          %448 = vmatpush.msra.mxu0 0.0
          %449 = vmatpush.msra.mxu0 0.0
          %450 = vmatpush.msra.mxu0 0.0
          %451 = vmatpush.msra.mxu0 0.0
          %452 = vmatpush.msra.mxu0 0.0
          %453 = vmatpush.msra.mxu0 0.0
          %454 = vmatpush.msra.mxu0 0.0
          %455 = vmatpush.msra.mxu0 0.0
          %456 = vmatpush.msra.mxu0 0.0
          %457 = vmatpush.msra.mxu0 %v420
          %458 = vmatmul.f32.gmra.mxu0 %v416
          %v459 = vpop.f32.mrf.mxu0
          %v460 = vadd.f32 0.0, %v459
          %461 = vdwg.mxu0
          %v462 = vadd.f32 %v392, %v440
          %v463 = vadd.f32 %v393, %v460
          %v464 = vld [vmem:[#allocation2] sm:$0xff]
          %v465 = vld [vmem:[#allocation2 + $0x8] sm:$0xf]
          %v466 = vsel %vm313, 1, 0
          %v467 = vsel %vm314, 1, 0
          %vm468 = vcmp.eq.s32.totalorder %v466, 1
          %vm469 = vcmp.eq.s32.totalorder %v467, 1
          %472 = vst [vmem:[#allocation1] ss:$2 sm:$0xff] %v464
          %s473 = scalar_lea.vmem [#allocation1], 16
          %474 = vst [vmem:[%s473] ss:$2 sm:$0xff] %v465
          %v475 = vld.sshfl [vmem:[#allocation1] sm:$0xff pattern:$0x75316420]
          %v476 = vld.sshfl [vmem:[#allocation1 + $0x8] sm:$0xff pattern:$0x75316420]
          %v477 = vld.sshfl [vmem:[#allocation1 + $0x10] sm:$0xff pattern:$0x75316420]
          %478 = vrot.lane.b32.xlu0 %v475, 30
          %v479 = vpop.permute.xlu0 %478
          %480 = vrot.lane.b32.xlu0 %v476, 30
          %v481 = vpop.permute.xlu0 %480
          %482 = vrot.lane.b32.xlu0 %v477, 30
          %v483 = vpop.permute.xlu0 %482
          %vm484 = vcmask 244736
          %v485 = vsel %vm484, %v479, %v481
          %v486 = vsel %vm484, %v481, %v483
          %v489 = vsel %vm468, %v485, 0.0
          %v490 = vsel %vm469, %v486, 0.0
          %s491 = scalar_lea.vmem %s175, 8
          %v492 = vld [vmem:[%s491] sm:$0xf]
          %v494 = vsel %vm191, %v492, 0
          %v497 = vsel %vm195, %v489, 0
          %v500 = vsel %vm195, %v490, 0
          %502 = vmatpush.msra.mxu0 0.0
          %503 = vmatpush.msra.mxu0 0.0
          %504 = vmatpush.msra.mxu0 0.0
          %505 = vmatpush.msra.mxu0 0.0
          %506 = vmatpush.msra.mxu0 0.0
          %507 = vmatpush.msra.mxu0 0.0
          %508 = vmatpush.msra.mxu0 0.0
          %509 = vmatpush.msra.mxu0 0.0
          %510 = vmatpush.msra.mxu0 0.0
          %511 = vmatpush.msra.mxu0 0.0
          %512 = vmatpush.msra.mxu0 0.0
          %513 = vmatpush.msra.mxu0 0.0
          %514 = vmatpush.msra.mxu0 0.0
          %515 = vmatpush.msra.mxu0 0.0
          %516 = vmatpush.msra.mxu0 0.0
          %517 = vmatpush.msra.mxu0 %v497
          %518 = vmatmul.f32.gmra.mxu0 %v494
          %v519 = vpop.f32.mrf.mxu0
          %v520 = vadd.f32 0.0, %v519
          %521 = vdwg.mxu0
          %522 = vmatpush.msra.mxu0 0.0
          %523 = vmatpush.msra.mxu0 0.0
          %524 = vmatpush.msra.mxu0 0.0
          %525 = vmatpush.msra.mxu0 0.0
          %526 = vmatpush.msra.mxu0 0.0
          %527 = vmatpush.msra.mxu0 0.0
          %528 = vmatpush.msra.mxu0 0.0
          %529 = vmatpush.msra.mxu0 0.0
          %530 = vmatpush.msra.mxu0 0.0
          %531 = vmatpush.msra.mxu0 0.0
          %532 = vmatpush.msra.mxu0 0.0
          %533 = vmatpush.msra.mxu0 0.0
          %534 = vmatpush.msra.mxu0 0.0
          %535 = vmatpush.msra.mxu0 0.0
          %536 = vmatpush.msra.mxu0 0.0
          %537 = vmatpush.msra.mxu0 %v500
          %538 = vmatmul.f32.gmra.mxu0 %v494
          %v539 = vpop.f32.mrf.mxu0
          %v540 = vadd.f32 0.0, %v539
          %541 = vdwg.mxu0
          %v542 = vadd.f32 %v462, %v520
          %v543 = vadd.f32 %v463, %v540
          %v544 = vld [vmem:[#allocation2] sm:$0xff]
          %v545 = vld [vmem:[#allocation2 + $0x8] sm:$0xf]
          %548 = vst [vmem:[#allocation1] ss:$2 sm:$0xff] %v544
          %s549 = scalar_lea.vmem [#allocation1], 16
          %550 = vst [vmem:[%s549] ss:$2 sm:$0xff] %v545
          %v551 = vld.sshfl [vmem:[#allocation1] sm:$0xff pattern:$0x75316420]
          %v552 = vld.sshfl [vmem:[#allocation1 + $0x8] sm:$0xff pattern:$0x75316420]
          %v553 = vld.sshfl [vmem:[#allocation1 + $0x10] sm:$0xff pattern:$0x75316420]
          %554 = vrot.lane.b32.xlu0 %v551, 2
          %v555 = vpop.permute.xlu0 %554
          %556 = vrot.lane.b32.xlu0 %v552, 2
          %v557 = vpop.permute.xlu0 %556
          %558 = vrot.lane.b32.xlu0 %v553, 2
          %v559 = vpop.permute.xlu0 %558
          %vm560 = vcmask 15360
          %v561 = vsel %vm560, %v555, %v557
          %v562 = vsel %vm560, %v557, %v559
          %v565 = vsel %vm319, %v561, 0.0
          %v566 = vsel %vm320, %v562, 0.0
          %s567 = scalar_lea.vmem %s175, 12
          %v568 = vld [vmem:[%s567] sm:$0xf]
          %v570 = vsel %vm191, %v568, 0
          %v573 = vsel %vm195, %v565, 0
          %v576 = vsel %vm195, %v566, 0
          %578 = vmatpush.msra.mxu0 0.0
          %579 = vmatpush.msra.mxu0 0.0
          %580 = vmatpush.msra.mxu0 0.0
          %581 = vmatpush.msra.mxu0 0.0
          %582 = vmatpush.msra.mxu0 0.0
          %583 = vmatpush.msra.mxu0 0.0
          %584 = vmatpush.msra.mxu0 0.0
          %585 = vmatpush.msra.mxu0 0.0
          %586 = vmatpush.msra.mxu0 0.0
          %587 = vmatpush.msra.mxu0 0.0
          %588 = vmatpush.msra.mxu0 0.0
          %589 = vmatpush.msra.mxu0 0.0
          %590 = vmatpush.msra.mxu0 0.0
          %591 = vmatpush.msra.mxu0 0.0
          %592 = vmatpush.msra.mxu0 0.0
          %593 = vmatpush.msra.mxu0 %v573
          %594 = vmatmul.f32.gmra.mxu0 %v570
          %v595 = vpop.f32.mrf.mxu0
          %v596 = vadd.f32 0.0, %v595
          %597 = vdwg.mxu0
          %598 = vmatpush.msra.mxu0 0.0
          %599 = vmatpush.msra.mxu0 0.0
          %600 = vmatpush.msra.mxu0 0.0
          %601 = vmatpush.msra.mxu0 0.0
          %602 = vmatpush.msra.mxu0 0.0
          %603 = vmatpush.msra.mxu0 0.0
          %604 = vmatpush.msra.mxu0 0.0
          %605 = vmatpush.msra.mxu0 0.0
          %606 = vmatpush.msra.mxu0 0.0
          %607 = vmatpush.msra.mxu0 0.0
          %608 = vmatpush.msra.mxu0 0.0
          %609 = vmatpush.msra.mxu0 0.0
          %610 = vmatpush.msra.mxu0 0.0
          %611 = vmatpush.msra.mxu0 0.0
          %612 = vmatpush.msra.mxu0 0.0
          %613 = vmatpush.msra.mxu0 %v576
          %614 = vmatmul.f32.gmra.mxu0 %v570
          %v615 = vpop.f32.mrf.mxu0
          %v616 = vadd.f32 0.0, %v615
          %617 = vdwg.mxu0
          %v618 = vadd.f32 %v542, %v596
          %v619 = vadd.f32 %v543, %v616
          %v620 = vld [vmem:[#allocation2 + $0x4] sm:$0xff]
          %v621 = vld [vmem:[#allocation2 + $0xc] sm:$0xf]
          %624 = vst [vmem:[#allocation1] ss:$2 sm:$0xff] %v620
          %s625 = scalar_lea.vmem [#allocation1], 16
          %626 = vst [vmem:[%s625] ss:$2 sm:$0xff] %v621
          %v627 = vld.sshfl [vmem:[#allocation1] sm:$0xff pattern:$0x75316420]
          %v628 = vld.sshfl [vmem:[#allocation1 + $0x8] sm:$0xff pattern:$0x75316420]
          %v629 = vld.sshfl [vmem:[#allocation1 + $0x10] sm:$0xff pattern:$0x75316420]
          %630 = vrot.lane.b32.xlu0 %v627, 126
          %v631 = vpop.permute.xlu0 %630
          %632 = vrot.lane.b32.xlu0 %v628, 126
          %v633 = vpop.permute.xlu0 %632
          %634 = vrot.lane.b32.xlu0 %v629, 126
          %v635 = vpop.permute.xlu0 %634
          %vm636 = vcmask 1031168
          %v637 = vsel %vm636, %v631, %v633
          %v638 = vsel %vm636, %v633, %v635
          %v641 = vsel %vm468, %v637, 0.0
          %v642 = vsel %vm469, %v638, 0.0
          %s643 = scalar_lea.vmem %s175, 20
          %v644 = vld [vmem:[%s643] sm:$0xf]
          %v646 = vsel %vm191, %v644, 0
          %v649 = vsel %vm195, %v641, 0
          %v652 = vsel %vm195, %v642, 0
          %654 = vmatpush.msra.mxu0 0.0
          %655 = vmatpush.msra.mxu0 0.0
          %656 = vmatpush.msra.mxu0 0.0
          %657 = vmatpush.msra.mxu0 0.0
          %658 = vmatpush.msra.mxu0 0.0
          %659 = vmatpush.msra.mxu0 0.0
          %660 = vmatpush.msra.mxu0 0.0
          %661 = vmatpush.msra.mxu0 0.0
          %662 = vmatpush.msra.mxu0 0.0
          %663 = vmatpush.msra.mxu0 0.0
          %664 = vmatpush.msra.mxu0 0.0
          %665 = vmatpush.msra.mxu0 0.0
          %666 = vmatpush.msra.mxu0 0.0
          %667 = vmatpush.msra.mxu0 0.0
          %668 = vmatpush.msra.mxu0 0.0
          %669 = vmatpush.msra.mxu0 %v649
          %670 = vmatmul.f32.gmra.mxu0 %v646
          %v671 = vpop.f32.mrf.mxu0
          %v672 = vadd.f32 0.0, %v671
          %673 = vdwg.mxu0
          %674 = vmatpush.msra.mxu0 0.0
          %675 = vmatpush.msra.mxu0 0.0
          %676 = vmatpush.msra.mxu0 0.0
          %677 = vmatpush.msra.mxu0 0.0
          %678 = vmatpush.msra.mxu0 0.0
          %679 = vmatpush.msra.mxu0 0.0
          %680 = vmatpush.msra.mxu0 0.0
          %681 = vmatpush.msra.mxu0 0.0
          %682 = vmatpush.msra.mxu0 0.0
          %683 = vmatpush.msra.mxu0 0.0
          %684 = vmatpush.msra.mxu0 0.0
          %685 = vmatpush.msra.mxu0 0.0
          %686 = vmatpush.msra.mxu0 0.0
          %687 = vmatpush.msra.mxu0 0.0
          %688 = vmatpush.msra.mxu0 0.0
          %689 = vmatpush.msra.mxu0 %v652
          %690 = vmatmul.f32.gmra.mxu0 %v646
          %v691 = vpop.f32.mrf.mxu0
          %v692 = vadd.f32 0.0, %v691
          %693 = vdwg.mxu0
          %v694 = vadd.f32 %v618, %v672
          %v695 = vadd.f32 %v619, %v692
          %v696 = vld [vmem:[#allocation2 + $0x4] sm:$0xff]
          %v697 = vld [vmem:[#allocation2 + $0xc] sm:$0xf]
          %700 = vst [vmem:[#allocation1] ss:$2 sm:$0xff] %v696
          %s701 = scalar_lea.vmem [#allocation1], 16
          %702 = vst [vmem:[%s701] ss:$2 sm:$0xff] %v697
          %v703 = vld.sshfl [vmem:[#allocation1] sm:$0xff pattern:$0x75316420]
          %v704 = vld.sshfl [vmem:[#allocation1 + $0x8] sm:$0xff pattern:$0x75316420]
          %v705 = vld.sshfl [vmem:[#allocation1 + $0x10] sm:$0xff pattern:$0x75316420]
          %706 = vrot.lane.b32.xlu0 %v703, 98
          %v707 = vpop.permute.xlu0 %706
          %708 = vrot.lane.b32.xlu0 %v704, 98
          %v709 = vpop.permute.xlu0 %708
          %710 = vrot.lane.b32.xlu0 %v705, 98
          %v711 = vpop.permute.xlu0 %710
          %vm712 = vcmask 801792
          %v713 = vsel %vm712, %v707, %v709
          %v714 = vsel %vm712, %v709, %v711
          %v717 = vsel %vm319, %v713, 0.0
          %v718 = vsel %vm320, %v714, 0.0
          %s719 = scalar_lea.vmem %s175, 24
          %v720 = vld [vmem:[%s719] sm:$0xf]
          %v722 = vsel %vm191, %v720, 0
          %v725 = vsel %vm195, %v717, 0
          %v728 = vsel %vm195, %v718, 0
          %730 = vmatpush.msra.mxu0 0.0
          %731 = vmatpush.msra.mxu0 0.0
          %732 = vmatpush.msra.mxu0 0.0
          %733 = vmatpush.msra.mxu0 0.0
          %734 = vmatpush.msra.mxu0 0.0
          %735 = vmatpush.msra.mxu0 0.0
          %736 = vmatpush.msra.mxu0 0.0
          %737 = vmatpush.msra.mxu0 0.0
          %738 = vmatpush.msra.mxu0 0.0
          %739 = vmatpush.msra.mxu0 0.0
          %740 = vmatpush.msra.mxu0 0.0
          %741 = vmatpush.msra.mxu0 0.0
          %742 = vmatpush.msra.mxu0 0.0
          %743 = vmatpush.msra.mxu0 0.0
          %744 = vmatpush.msra.mxu0 0.0
          %745 = vmatpush.msra.mxu0 %v725
          %746 = vmatmul.f32.gmra.mxu0 %v722
          %v747 = vpop.f32.mrf.mxu0
          %v748 = vadd.f32 0.0, %v747
          %749 = vdwg.mxu0
          %750 = vmatpush.msra.mxu0 0.0
          %751 = vmatpush.msra.mxu0 0.0
          %752 = vmatpush.msra.mxu0 0.0
          %753 = vmatpush.msra.mxu0 0.0
          %754 = vmatpush.msra.mxu0 0.0
          %755 = vmatpush.msra.mxu0 0.0
          %756 = vmatpush.msra.mxu0 0.0
          %757 = vmatpush.msra.mxu0 0.0
          %758 = vmatpush.msra.mxu0 0.0
          %759 = vmatpush.msra.mxu0 0.0
          %760 = vmatpush.msra.mxu0 0.0
          %761 = vmatpush.msra.mxu0 0.0
          %762 = vmatpush.msra.mxu0 0.0
          %763 = vmatpush.msra.mxu0 0.0
          %764 = vmatpush.msra.mxu0 0.0
          %765 = vmatpush.msra.mxu0 %v728
          %766 = vmatmul.f32.gmra.mxu0 %v722
          %v767 = vpop.f32.mrf.mxu0
          %v768 = vadd.f32 0.0, %v767
          %769 = vdwg.mxu0
          %v770 = vadd.f32 %v694, %v748
          %v771 = vadd.f32 %v695, %v768
          %v772 = vld [vmem:[#allocation2 + $0x4] sm:$0xff]
          %v773 = vld [vmem:[#allocation2 + $0xc] sm:$0xf]
          %s774 = scalar_lea.vmem %s175, 28
          %v775 = vld [vmem:[%s774] sm:$0xf]
          %778 = vst [vmem:[#allocation1] ss:$2 sm:$0xff] %v772
          %s779 = scalar_lea.vmem [#allocation1], 16
          %780 = vst [vmem:[%s779] ss:$2 sm:$0xff] %v773
          %v781 = vld.sshfl [vmem:[#allocation1] sm:$0xff pattern:$0x75316420]
          %v782 = vld.sshfl [vmem:[#allocation1 + $0x8] sm:$0xff pattern:$0x75316420]
          %v783 = vld.sshfl [vmem:[#allocation1 + $0x10] sm:$0xff pattern:$0x75316420]
          %784 = vrot.lane.b32.xlu0 %v781, 96
          %v785 = vpop.permute.xlu0 %784
          %786 = vrot.lane.b32.xlu0 %v782, 96
          %v787 = vpop.permute.xlu0 %786
          %788 = vrot.lane.b32.xlu0 %v783, 96
          %v789 = vpop.permute.xlu0 %788
          %vm790 = vcmask 785408
          %v791 = vsel %vm790, %v785, %v787
          %v792 = vsel %vm790, %v787, %v789
          %v794 = vsel %vm191, %v775, 0
          %v796 = vsel %vm195, %v791, 0
          %v798 = vsel %vm195, %v792, 0
          %800 = vmatpush.msra.mxu0 0.0
          %801 = vmatpush.msra.mxu0 0.0
          %802 = vmatpush.msra.mxu0 0.0
          %803 = vmatpush.msra.mxu0 0.0
          %804 = vmatpush.msra.mxu0 0.0
          %805 = vmatpush.msra.mxu0 0.0
          %806 = vmatpush.msra.mxu0 0.0
          %807 = vmatpush.msra.mxu0 0.0
          %808 = vmatpush.msra.mxu0 0.0
          %809 = vmatpush.msra.mxu0 0.0
          %810 = vmatpush.msra.mxu0 0.0
          %811 = vmatpush.msra.mxu0 0.0
          %812 = vmatpush.msra.mxu0 0.0
          %813 = vmatpush.msra.mxu0 0.0
          %814 = vmatpush.msra.mxu0 0.0
          %815 = vmatpush.msra.mxu0 %v796
          %816 = vmatmul.f32.gmra.mxu0 %v794
          %v817 = vpop.f32.mrf.mxu0
          %v818 = vadd.f32 0.0, %v817
          %819 = vdwg.mxu0
          %820 = vmatpush.msra.mxu0 0.0
          %821 = vmatpush.msra.mxu0 0.0
          %822 = vmatpush.msra.mxu0 0.0
          %823 = vmatpush.msra.mxu0 0.0
          %824 = vmatpush.msra.mxu0 0.0
          %825 = vmatpush.msra.mxu0 0.0
          %826 = vmatpush.msra.mxu0 0.0
          %827 = vmatpush.msra.mxu0 0.0
          %828 = vmatpush.msra.mxu0 0.0
          %829 = vmatpush.msra.mxu0 0.0
          %830 = vmatpush.msra.mxu0 0.0
          %831 = vmatpush.msra.mxu0 0.0
          %832 = vmatpush.msra.mxu0 0.0
          %833 = vmatpush.msra.mxu0 0.0
          %834 = vmatpush.msra.mxu0 0.0
          %835 = vmatpush.msra.mxu0 %v798
          %836 = vmatmul.f32.gmra.mxu0 %v794
          %v837 = vpop.f32.mrf.mxu0
          %v838 = vadd.f32 0.0, %v837
          %839 = vdwg.mxu0
          %v840 = vadd.f32 %v770, %v818
          %v841 = vadd.f32 %v771, %v838
          %v842 = vld [vmem:[#allocation2 + $0x4] sm:$0xff]
          %v843 = vld [vmem:[#allocation2 + $0xc] sm:$0xf]
          %846 = vst [vmem:[#allocation1] ss:$2 sm:$0xff] %v842
          %s847 = scalar_lea.vmem [#allocation1], 16
          %848 = vst [vmem:[%s847] ss:$2 sm:$0xff] %v843
          %v849 = vld.sshfl [vmem:[#allocation1] sm:$0xff pattern:$0x75316420]
          %v850 = vld.sshfl [vmem:[#allocation1 + $0x8] sm:$0xff pattern:$0x75316420]
          %v851 = vld.sshfl [vmem:[#allocation1 + $0x10] sm:$0xff pattern:$0x75316420]
          %852 = vrot.lane.b32.xlu0 %v849, 94
          %v853 = vpop.permute.xlu0 %852
          %854 = vrot.lane.b32.xlu0 %v850, 94
          %v855 = vpop.permute.xlu0 %854
          %856 = vrot.lane.b32.xlu0 %v851, 94
          %v857 = vpop.permute.xlu0 %856
          %vm858 = vcmask 769024
          %v859 = vsel %vm858, %v853, %v855
          %v860 = vsel %vm858, %v855, %v857
          %v863 = vsel %vm468, %v859, 0.0
          %v864 = vsel %vm469, %v860, 0.0
          %s865 = scalar_lea.vmem %s175, 32
          %v866 = vld [vmem:[%s865] sm:$0xf]
          %v868 = vsel %vm191, %v866, 0
          %v871 = vsel %vm195, %v863, 0
          %v874 = vsel %vm195, %v864, 0
          %876 = vmatpush.msra.mxu0 0.0
          %877 = vmatpush.msra.mxu0 0.0
          %878 = vmatpush.msra.mxu0 0.0
          %879 = vmatpush.msra.mxu0 0.0
          %880 = vmatpush.msra.mxu0 0.0
          %881 = vmatpush.msra.mxu0 0.0
          %882 = vmatpush.msra.mxu0 0.0
          %883 = vmatpush.msra.mxu0 0.0
          %884 = vmatpush.msra.mxu0 0.0
          %885 = vmatpush.msra.mxu0 0.0
          %886 = vmatpush.msra.mxu0 0.0
          %887 = vmatpush.msra.mxu0 0.0
          %888 = vmatpush.msra.mxu0 0.0
          %889 = vmatpush.msra.mxu0 0.0
          %890 = vmatpush.msra.mxu0 0.0
          %891 = vmatpush.msra.mxu0 %v871
          %892 = vmatmul.f32.gmra.mxu0 %v868
          %v893 = vpop.f32.mrf.mxu0
          %v894 = vadd.f32 0.0, %v893
          %895 = vdwg.mxu0
          %896 = vmatpush.msra.mxu0 0.0
          %897 = vmatpush.msra.mxu0 0.0
          %898 = vmatpush.msra.mxu0 0.0
          %899 = vmatpush.msra.mxu0 0.0
          %900 = vmatpush.msra.mxu0 0.0
          %901 = vmatpush.msra.mxu0 0.0
          %902 = vmatpush.msra.mxu0 0.0
          %903 = vmatpush.msra.mxu0 0.0
          %904 = vmatpush.msra.mxu0 0.0
          %905 = vmatpush.msra.mxu0 0.0
          %906 = vmatpush.msra.mxu0 0.0
          %907 = vmatpush.msra.mxu0 0.0
          %908 = vmatpush.msra.mxu0 0.0
          %909 = vmatpush.msra.mxu0 0.0
          %910 = vmatpush.msra.mxu0 0.0
          %911 = vmatpush.msra.mxu0 %v874
          %912 = vmatmul.f32.gmra.mxu0 %v868
          %v913 = vpop.f32.mrf.mxu0
          %v914 = vadd.f32 0.0, %v913
          %915 = vdwg.mxu0
          %v916 = vadd.f32 %v840, %v894
          %v917 = vadd.f32 %v841, %v914
          %v918 = vsel %vm195, %v916, 0.0
          %v919 = vsel %vm195, %v917, 0.0
          %v920 = vadd.f32 %v918, %v919
          %921 = vadd.xlane.f32.xlu0 %v920
          %v922 = vpop.xlane.xlu0 %921
          %v923 = vmul.f32 %v922, 0.00390625
          %v924 = vsub.f32 %v916, %v923
          %v925 = vsub.f32 %v917, %v923
          %v926 = vmul.f32 %v924, %v924
          %v927 = vmul.f32 %v925, %v925
          %v928 = vsel %vm195, %v926, 0.0
          %v929 = vsel %vm195, %v927, 0.0
          %v930 = vadd.f32 %v928, %v929
          %931 = vadd.xlane.f32.xlu0 %v930
          %v932 = vpop.xlane.xlu0 %931
          %v933 = vmul.f32 %v932, 0.00390625
          %v934 = vadd.f32 %v933, 1e-05
          %v935 = vrsqrt.pop %v934
          %v936 = vmul.f32 %v935, %v934
          %v937 = vmul.f32 %v936, %v935
          %v938 = vmul.f32 0.5, %v937
          %v939 = vsub.f32 1.5, %v938
          %v940 = vmul.f32 %v935, %v939
          %vm941 = vweird.f32 %v934
          %vm942 = vweird.f32 %v935
          %vm943 = vmor %vm941, %vm942
          %v944 = vsel %vm943, %v935, %v940
          %v945 = vmul.f32 %v924, %v944
          %v946 = vmul.f32 %v925, %v944
          %v947 = vmax.f32 %v945, 0.0
          %v948 = vmax.f32 %v946, 0.0
          %v951 = vrot.slane %v948, 4
          %v952 = vsel %vm195, %v947, %v951
          %954 = vst [vmem:[%s165] sm:$0xff] %v952
        $region40: #{tpu_custom_call.1} parent=27 // pred_fallthru
          _
        %p955 = scmp.eq.s32.totalorder %s21, 2
        // Predicated region
        $region41: #{tpu_custom_call.1} parent=27 // pred_check
          %p956 = pneg %p955
        $region42: #{tpu_custom_call.1} parent=27 // pred_check_branch
          %958 = sbr.rel (%p956) target = $region44
        $region43: #{tpu_custom_call.1} parent=27 // pred_region
          %vm959 = vcmp.ge.s32.totalorder %v305, 4
          %vm960 = vcmp.ge.s32.totalorder %v306, 4
          %vm961 = vcmp.lt.s32.totalorder %v305, 12
          %vm962 = vcmp.lt.s32.totalorder %v306, 12
          %v963 = vld [vmem:[#allocation2] sm:$0xff]
          %v964 = vld [vmem:[#allocation2 + $0x8] sm:$0xf]
          %v965 = vsel %vm959, 1, 0
          %v966 = vsel %vm960, 1, 0
          %vm967 = vcmp.eq.s32.totalorder %v965, 1
          %vm968 = vcmp.eq.s32.totalorder %v966, 1
          %971 = vst [vmem:[#allocation1] ss:$2 sm:$0xff] %v963
          %s972 = scalar_lea.vmem [#allocation1], 16
          %973 = vst [vmem:[%s972] ss:$2 sm:$0xff] %v964
          %v974 = vld.sshfl [vmem:[#allocation1] sm:$0xff pattern:$0x75316420]
          %v975 = vld.sshfl [vmem:[#allocation1 + $0x8] sm:$0xff pattern:$0x75316420]
          %v976 = vld.sshfl [vmem:[#allocation1 + $0x10] sm:$0xff pattern:$0x75316420]
          %977 = vrot.lane.b32.xlu0 %v974, 68
          %v978 = vpop.permute.xlu0 %977
          %979 = vrot.lane.b32.xlu0 %v975, 68
          %v980 = vpop.permute.xlu0 %979
          %981 = vrot.lane.b32.xlu0 %v976, 68
          %v982 = vpop.permute.xlu0 %981
          %vm983 = vcmask 556032
          %v984 = vsel %vm983, %v978, %v980
          %v985 = vsel %vm983, %v980, %v982
          %v988 = vsel %vm967, %v984, 0.0
          %v989 = vsel %vm968, %v985, 0.0
          %v990 = vld [vmem:[%s175] sm:$0xf]
          %v992 = vsel %vm191, %v990, 0
          %v995 = vsel %vm195, %v988, 0
          %v998 = vsel %vm195, %v989, 0
          %1000 = vmatpush.msra.mxu0 0.0
          %1001 = vmatpush.msra.mxu0 0.0
          %1002 = vmatpush.msra.mxu0 0.0
          %1003 = vmatpush.msra.mxu0 0.0
          %1004 = vmatpush.msra.mxu0 0.0
          %1005 = vmatpush.msra.mxu0 0.0
          %1006 = vmatpush.msra.mxu0 0.0
          %1007 = vmatpush.msra.mxu0 0.0
          %1008 = vmatpush.msra.mxu0 0.0
          %1009 = vmatpush.msra.mxu0 0.0
          %1010 = vmatpush.msra.mxu0 0.0
          %1011 = vmatpush.msra.mxu0 0.0
          %1012 = vmatpush.msra.mxu0 0.0
          %1013 = vmatpush.msra.mxu0 0.0
          %1014 = vmatpush.msra.mxu0 0.0
          %1015 = vmatpush.msra.mxu0 %v995
          %1016 = vmatmul.f32.gmra.mxu0 %v992
          %v1017 = vpop.f32.mrf.mxu0
          %v1018 = vadd.f32 0.0, %v1017
          %1019 = vdwg.mxu0
          %1020 = vmatpush.msra.mxu0 0.0
          %1021 = vmatpush.msra.mxu0 0.0
          %1022 = vmatpush.msra.mxu0 0.0
          %1023 = vmatpush.msra.mxu0 0.0
          %1024 = vmatpush.msra.mxu0 0.0
          %1025 = vmatpush.msra.mxu0 0.0
          %1026 = vmatpush.msra.mxu0 0.0
          %1027 = vmatpush.msra.mxu0 0.0
          %1028 = vmatpush.msra.mxu0 0.0
          %1029 = vmatpush.msra.mxu0 0.0
          %1030 = vmatpush.msra.mxu0 0.0
          %1031 = vmatpush.msra.mxu0 0.0
          %1032 = vmatpush.msra.mxu0 0.0
          %1033 = vmatpush.msra.mxu0 0.0
          %1034 = vmatpush.msra.mxu0 0.0
          %1035 = vmatpush.msra.mxu0 %v998
          %1036 = vmatmul.f32.gmra.mxu0 %v992
          %v1037 = vpop.f32.mrf.mxu0
          %v1038 = vadd.f32 0.0, %v1037
          %1039 = vdwg.mxu0
          %v1040 = vadd.f32 %v218, %v1018
          %v1041 = vadd.f32 %v238, %v1038
          %v1042 = vld [vmem:[#allocation2] sm:$0xff]
          %v1043 = vld [vmem:[#allocation2 + $0x8] sm:$0xf]
          %s1044 = scalar_lea.vmem %s175, 4
          %v1045 = vld [vmem:[%s1044] sm:$0xf]
          %1048 = vst [vmem:[#allocation1] ss:$2 sm:$0xff] %v1042
          %s1049 = scalar_lea.vmem [#allocation1], 16
          %1050 = vst [vmem:[%s1049] ss:$2 sm:$0xff] %v1043
          %v1051 = vld.sshfl [vmem:[#allocation1] sm:$0xff pattern:$0x75316420]
          %v1052 = vld.sshfl [vmem:[#allocation1 + $0x8] sm:$0xff pattern:$0x75316420]
          %v1053 = vld.sshfl [vmem:[#allocation1 + $0x10] sm:$0xff pattern:$0x75316420]
          %1054 = vrot.lane.b32.xlu0 %v1051, 64
          %v1055 = vpop.permute.xlu0 %1054
          %1056 = vrot.lane.b32.xlu0 %v1052, 64
          %v1057 = vpop.permute.xlu0 %1056
          %1058 = vrot.lane.b32.xlu0 %v1053, 64
          %v1059 = vpop.permute.xlu0 %1058
          %vm1060 = vcmask 523264
          %v1061 = vsel %vm1060, %v1055, %v1057
          %v1062 = vsel %vm1060, %v1057, %v1059
          %v1064 = vsel %vm191, %v1045, 0
          %v1066 = vsel %vm195, %v1061, 0
          %v1068 = vsel %vm195, %v1062, 0
          %1070 = vmatpush.msra.mxu0 0.0
          %1071 = vmatpush.msra.mxu0 0.0
          %1072 = vmatpush.msra.mxu0 0.0
          %1073 = vmatpush.msra.mxu0 0.0
          %1074 = vmatpush.msra.mxu0 0.0
          %1075 = vmatpush.msra.mxu0 0.0
          %1076 = vmatpush.msra.mxu0 0.0
          %1077 = vmatpush.msra.mxu0 0.0
          %1078 = vmatpush.msra.mxu0 0.0
          %1079 = vmatpush.msra.mxu0 0.0
          %1080 = vmatpush.msra.mxu0 0.0
          %1081 = vmatpush.msra.mxu0 0.0
          %1082 = vmatpush.msra.mxu0 0.0
          %1083 = vmatpush.msra.mxu0 0.0
          %1084 = vmatpush.msra.mxu0 0.0
          %1085 = vmatpush.msra.mxu0 %v1066
          %1086 = vmatmul.f32.gmra.mxu0 %v1064
          %v1087 = vpop.f32.mrf.mxu0
          %v1088 = vadd.f32 0.0, %v1087
          %1089 = vdwg.mxu0
          %1090 = vmatpush.msra.mxu0 0.0
          %1091 = vmatpush.msra.mxu0 0.0
          %1092 = vmatpush.msra.mxu0 0.0
          %1093 = vmatpush.msra.mxu0 0.0
          %1094 = vmatpush.msra.mxu0 0.0
          %1095 = vmatpush.msra.mxu0 0.0
          %1096 = vmatpush.msra.mxu0 0.0
          %1097 = vmatpush.msra.mxu0 0.0
          %1098 = vmatpush.msra.mxu0 0.0
          %1099 = vmatpush.msra.mxu0 0.0
          %1100 = vmatpush.msra.mxu0 0.0
          %1101 = vmatpush.msra.mxu0 0.0
          %1102 = vmatpush.msra.mxu0 0.0
          %1103 = vmatpush.msra.mxu0 0.0
          %1104 = vmatpush.msra.mxu0 0.0
          %1105 = vmatpush.msra.mxu0 %v1068
          %1106 = vmatmul.f32.gmra.mxu0 %v1064
          %v1107 = vpop.f32.mrf.mxu0
          %v1108 = vadd.f32 0.0, %v1107
          %1109 = vdwg.mxu0
          %v1110 = vadd.f32 %v1040, %v1088
          %v1111 = vadd.f32 %v1041, %v1108
          %v1112 = vld [vmem:[#allocation2] sm:$0xff]
          %v1113 = vld [vmem:[#allocation2 + $0x8] sm:$0xf]
          %v1114 = vsel %vm961, 1, 0
          %v1115 = vsel %vm962, 1, 0
          %vm1116 = vcmp.eq.s32.totalorder %v1114, 1
          %vm1117 = vcmp.eq.s32.totalorder %v1115, 1
          %1120 = vst [vmem:[#allocation1] ss:$2 sm:$0xff] %v1112
          %s1121 = scalar_lea.vmem [#allocation1], 16
          %1122 = vst [vmem:[%s1121] ss:$2 sm:$0xff] %v1113
          %v1123 = vld.sshfl [vmem:[#allocation1] sm:$0xff pattern:$0x75316420]
          %v1124 = vld.sshfl [vmem:[#allocation1 + $0x8] sm:$0xff pattern:$0x75316420]
          %v1125 = vld.sshfl [vmem:[#allocation1 + $0x10] sm:$0xff pattern:$0x75316420]
          %1126 = vrot.lane.b32.xlu0 %v1123, 60
          %v1127 = vpop.permute.xlu0 %1126
          %1128 = vrot.lane.b32.xlu0 %v1124, 60
          %v1129 = vpop.permute.xlu0 %1128
          %1130 = vrot.lane.b32.xlu0 %v1125, 60
          %v1131 = vpop.permute.xlu0 %1130
          %vm1132 = vcmask 490496
          %v1133 = vsel %vm1132, %v1127, %v1129
          %v1134 = vsel %vm1132, %v1129, %v1131
          %v1137 = vsel %vm1116, %v1133, 0.0
          %v1138 = vsel %vm1117, %v1134, 0.0
          %s1139 = scalar_lea.vmem %s175, 8
          %v1140 = vld [vmem:[%s1139] sm:$0xf]
          %v1142 = vsel %vm191, %v1140, 0
          %v1145 = vsel %vm195, %v1137, 0
          %v1148 = vsel %vm195, %v1138, 0
          %1150 = vmatpush.msra.mxu0 0.0
          %1151 = vmatpush.msra.mxu0 0.0
          %1152 = vmatpush.msra.mxu0 0.0
          %1153 = vmatpush.msra.mxu0 0.0
          %1154 = vmatpush.msra.mxu0 0.0
          %1155 = vmatpush.msra.mxu0 0.0
          %1156 = vmatpush.msra.mxu0 0.0
          %1157 = vmatpush.msra.mxu0 0.0
          %1158 = vmatpush.msra.mxu0 0.0
          %1159 = vmatpush.msra.mxu0 0.0
          %1160 = vmatpush.msra.mxu0 0.0
          %1161 = vmatpush.msra.mxu0 0.0
          %1162 = vmatpush.msra.mxu0 0.0
          %1163 = vmatpush.msra.mxu0 0.0
          %1164 = vmatpush.msra.mxu0 0.0
          %1165 = vmatpush.msra.mxu0 %v1145
          %1166 = vmatmul.f32.gmra.mxu0 %v1142
          %v1167 = vpop.f32.mrf.mxu0
          %v1168 = vadd.f32 0.0, %v1167
          %1169 = vdwg.mxu0
          %1170 = vmatpush.msra.mxu0 0.0
          %1171 = vmatpush.msra.mxu0 0.0
          %1172 = vmatpush.msra.mxu0 0.0
          %1173 = vmatpush.msra.mxu0 0.0
          %1174 = vmatpush.msra.mxu0 0.0
          %1175 = vmatpush.msra.mxu0 0.0
          %1176 = vmatpush.msra.mxu0 0.0
          %1177 = vmatpush.msra.mxu0 0.0
          %1178 = vmatpush.msra.mxu0 0.0
          %1179 = vmatpush.msra.mxu0 0.0
          %1180 = vmatpush.msra.mxu0 0.0
          %1181 = vmatpush.msra.mxu0 0.0
          %1182 = vmatpush.msra.mxu0 0.0
          %1183 = vmatpush.msra.mxu0 0.0
          %1184 = vmatpush.msra.mxu0 0.0
          %1185 = vmatpush.msra.mxu0 %v1148
          %1186 = vmatmul.f32.gmra.mxu0 %v1142
          %v1187 = vpop.f32.mrf.mxu0
          %v1188 = vadd.f32 0.0, %v1187
          %1189 = vdwg.mxu0
          %v1190 = vadd.f32 %v1110, %v1168
          %v1191 = vadd.f32 %v1111, %v1188
          %v1192 = vld [vmem:[#allocation2] sm:$0xff]
          %v1193 = vld [vmem:[#allocation2 + $0x8] sm:$0xf]
          %1196 = vst [vmem:[#allocation1] ss:$2 sm:$0xff] %v1192
          %s1197 = scalar_lea.vmem [#allocation1], 16
          %1198 = vst [vmem:[%s1197] ss:$2 sm:$0xff] %v1193
          %v1199 = vld.sshfl [vmem:[#allocation1] sm:$0xff pattern:$0x75316420]
          %v1200 = vld.sshfl [vmem:[#allocation1 + $0x8] sm:$0xff pattern:$0x75316420]
          %v1201 = vld.sshfl [vmem:[#allocation1 + $0x10] sm:$0xff pattern:$0x75316420]
          %1202 = vrot.lane.b32.xlu0 %v1199, 4
          %v1203 = vpop.permute.xlu0 %1202
          %1204 = vrot.lane.b32.xlu0 %v1200, 4
          %v1205 = vpop.permute.xlu0 %1204
          %1206 = vrot.lane.b32.xlu0 %v1201, 4
          %v1207 = vpop.permute.xlu0 %1206
          %v1208 = vsel %vm191, %v1203, %v1205
          %v1209 = vsel %vm191, %v1205, %v1207
          %v1212 = vsel %vm967, %v1208, 0.0
          %v1213 = vsel %vm968, %v1209, 0.0
          %s1214 = scalar_lea.vmem %s175, 12
          %v1215 = vld [vmem:[%s1214] sm:$0xf]
          %v1217 = vsel %vm191, %v1215, 0
          %v1220 = vsel %vm195, %v1212, 0
          %v1223 = vsel %vm195, %v1213, 0
          %1225 = vmatpush.msra.mxu0 0.0
          %1226 = vmatpush.msra.mxu0 0.0
          %1227 = vmatpush.msra.mxu0 0.0
          %1228 = vmatpush.msra.mxu0 0.0
          %1229 = vmatpush.msra.mxu0 0.0
          %1230 = vmatpush.msra.mxu0 0.0
          %1231 = vmatpush.msra.mxu0 0.0
          %1232 = vmatpush.msra.mxu0 0.0
          %1233 = vmatpush.msra.mxu0 0.0
          %1234 = vmatpush.msra.mxu0 0.0
          %1235 = vmatpush.msra.mxu0 0.0
          %1236 = vmatpush.msra.mxu0 0.0
          %1237 = vmatpush.msra.mxu0 0.0
          %1238 = vmatpush.msra.mxu0 0.0
          %1239 = vmatpush.msra.mxu0 0.0
          %1240 = vmatpush.msra.mxu0 %v1220
          %1241 = vmatmul.f32.gmra.mxu0 %v1217
          %v1242 = vpop.f32.mrf.mxu0
          %v1243 = vadd.f32 0.0, %v1242
          %1244 = vdwg.mxu0
          %1245 = vmatpush.msra.mxu0 0.0
          %1246 = vmatpush.msra.mxu0 0.0
          %1247 = vmatpush.msra.mxu0 0.0
          %1248 = vmatpush.msra.mxu0 0.0
          %1249 = vmatpush.msra.mxu0 0.0
          %1250 = vmatpush.msra.mxu0 0.0
          %1251 = vmatpush.msra.mxu0 0.0
          %1252 = vmatpush.msra.mxu0 0.0
          %1253 = vmatpush.msra.mxu0 0.0
          %1254 = vmatpush.msra.mxu0 0.0
          %1255 = vmatpush.msra.mxu0 0.0
          %1256 = vmatpush.msra.mxu0 0.0
          %1257 = vmatpush.msra.mxu0 0.0
          %1258 = vmatpush.msra.mxu0 0.0
          %1259 = vmatpush.msra.mxu0 0.0
          %1260 = vmatpush.msra.mxu0 %v1223
          %1261 = vmatmul.f32.gmra.mxu0 %v1217
          %v1262 = vpop.f32.mrf.mxu0
          %v1263 = vadd.f32 0.0, %v1262
          %1264 = vdwg.mxu0
          %v1265 = vadd.f32 %v1190, %v1243
          %v1266 = vadd.f32 %v1191, %v1263
          %v1267 = vld [vmem:[#allocation2 + $0x4] sm:$0xff]
          %v1268 = vld [vmem:[#allocation2 + $0xc] sm:$0xf]
          %1271 = vst [vmem:[#allocation1] ss:$2 sm:$0xff] %v1267
          %s1272 = scalar_lea.vmem [#allocation1], 16
          %1273 = vst [vmem:[%s1272] ss:$2 sm:$0xff] %v1268
          %v1274 = vld.sshfl [vmem:[#allocation1] sm:$0xff pattern:$0x75316420]
          %v1275 = vld.sshfl [vmem:[#allocation1 + $0x8] sm:$0xff pattern:$0x75316420]
          %v1276 = vld.sshfl [vmem:[#allocation1 + $0x10] sm:$0xff pattern:$0x75316420]
          %1277 = vrot.lane.b32.xlu0 %v1274, 124
          %v1278 = vpop.permute.xlu0 %1277
          %1279 = vrot.lane.b32.xlu0 %v1275, 124
          %v1280 = vpop.permute.xlu0 %1279
          %1281 = vrot.lane.b32.xlu0 %v1276, 124
          %v1282 = vpop.permute.xlu0 %1281
          %vm1283 = vcmask 1014784
          %v1284 = vsel %vm1283, %v1278, %v1280
          %v1285 = vsel %vm1283, %v1280, %v1282
          %v1288 = vsel %vm1116, %v1284, 0.0
          %v1289 = vsel %vm1117, %v1285, 0.0
          %s1290 = scalar_lea.vmem %s175, 20
          %v1291 = vld [vmem:[%s1290] sm:$0xf]
          %v1293 = vsel %vm191, %v1291, 0
          %v1296 = vsel %vm195, %v1288, 0
          %v1299 = vsel %vm195, %v1289, 0
          %1301 = vmatpush.msra.mxu0 0.0
          %1302 = vmatpush.msra.mxu0 0.0
          %1303 = vmatpush.msra.mxu0 0.0
          %1304 = vmatpush.msra.mxu0 0.0
          %1305 = vmatpush.msra.mxu0 0.0
          %1306 = vmatpush.msra.mxu0 0.0
          %1307 = vmatpush.msra.mxu0 0.0
          %1308 = vmatpush.msra.mxu0 0.0
          %1309 = vmatpush.msra.mxu0 0.0
          %1310 = vmatpush.msra.mxu0 0.0
          %1311 = vmatpush.msra.mxu0 0.0
          %1312 = vmatpush.msra.mxu0 0.0
          %1313 = vmatpush.msra.mxu0 0.0
          %1314 = vmatpush.msra.mxu0 0.0
          %1315 = vmatpush.msra.mxu0 0.0
          %1316 = vmatpush.msra.mxu0 %v1296
          %1317 = vmatmul.f32.gmra.mxu0 %v1293
          %v1318 = vpop.f32.mrf.mxu0
          %v1319 = vadd.f32 0.0, %v1318
          %1320 = vdwg.mxu0
          %1321 = vmatpush.msra.mxu0 0.0
          %1322 = vmatpush.msra.mxu0 0.0
          %1323 = vmatpush.msra.mxu0 0.0
          %1324 = vmatpush.msra.mxu0 0.0
          %1325 = vmatpush.msra.mxu0 0.0
          %1326 = vmatpush.msra.mxu0 0.0
          %1327 = vmatpush.msra.mxu0 0.0
          %1328 = vmatpush.msra.mxu0 0.0
          %1329 = vmatpush.msra.mxu0 0.0
          %1330 = vmatpush.msra.mxu0 0.0
          %1331 = vmatpush.msra.mxu0 0.0
          %1332 = vmatpush.msra.mxu0 0.0
          %1333 = vmatpush.msra.mxu0 0.0
          %1334 = vmatpush.msra.mxu0 0.0
          %1335 = vmatpush.msra.mxu0 0.0
          %1336 = vmatpush.msra.mxu0 %v1299
          %1337 = vmatmul.f32.gmra.mxu0 %v1293
          %v1338 = vpop.f32.mrf.mxu0
          %v1339 = vadd.f32 0.0, %v1338
          %1340 = vdwg.mxu0
          %v1341 = vadd.f32 %v1265, %v1319
          %v1342 = vadd.f32 %v1266, %v1339
          %v1343 = vld [vmem:[#allocation2 + $0x4] sm:$0xff]
          %v1344 = vld [vmem:[#allocation2 + $0xc] sm:$0xf]
          %1347 = vst [vmem:[#allocation1] ss:$2 sm:$0xff] %v1343
          %s1348 = scalar_lea.vmem [#allocation1], 16
          %1349 = vst [vmem:[%s1348] ss:$2 sm:$0xff] %v1344
          %v1350 = vld.sshfl [vmem:[#allocation1] sm:$0xff pattern:$0x75316420]
          %v1351 = vld.sshfl [vmem:[#allocation1 + $0x8] sm:$0xff pattern:$0x75316420]
          %v1352 = vld.sshfl [vmem:[#allocation1 + $0x10] sm:$0xff pattern:$0x75316420]
          %1353 = vrot.lane.b32.xlu0 %v1350, 68
          %v1354 = vpop.permute.xlu0 %1353
          %1355 = vrot.lane.b32.xlu0 %v1351, 68
          %v1356 = vpop.permute.xlu0 %1355
          %1357 = vrot.lane.b32.xlu0 %v1352, 68
          %v1358 = vpop.permute.xlu0 %1357
          %v1359 = vsel %vm983, %v1354, %v1356
          %v1360 = vsel %vm983, %v1356, %v1358
          %v1363 = vsel %vm967, %v1359, 0.0
          %v1364 = vsel %vm968, %v1360, 0.0
          %s1365 = scalar_lea.vmem %s175, 24
          %v1366 = vld [vmem:[%s1365] sm:$0xf]
          %v1368 = vsel %vm191, %v1366, 0
          %v1371 = vsel %vm195, %v1363, 0
          %v1374 = vsel %vm195, %v1364, 0
          %1376 = vmatpush.msra.mxu0 0.0
          %1377 = vmatpush.msra.mxu0 0.0
          %1378 = vmatpush.msra.mxu0 0.0
          %1379 = vmatpush.msra.mxu0 0.0
          %1380 = vmatpush.msra.mxu0 0.0
          %1381 = vmatpush.msra.mxu0 0.0
          %1382 = vmatpush.msra.mxu0 0.0
          %1383 = vmatpush.msra.mxu0 0.0
          %1384 = vmatpush.msra.mxu0 0.0
          %1385 = vmatpush.msra.mxu0 0.0
          %1386 = vmatpush.msra.mxu0 0.0
          %1387 = vmatpush.msra.mxu0 0.0
          %1388 = vmatpush.msra.mxu0 0.0
          %1389 = vmatpush.msra.mxu0 0.0
          %1390 = vmatpush.msra.mxu0 0.0
          %1391 = vmatpush.msra.mxu0 %v1371
          %1392 = vmatmul.f32.gmra.mxu0 %v1368
          %v1393 = vpop.f32.mrf.mxu0
          %v1394 = vadd.f32 0.0, %v1393
          %1395 = vdwg.mxu0
          %1396 = vmatpush.msra.mxu0 0.0
          %1397 = vmatpush.msra.mxu0 0.0
          %1398 = vmatpush.msra.mxu0 0.0
          %1399 = vmatpush.msra.mxu0 0.0
          %1400 = vmatpush.msra.mxu0 0.0
          %1401 = vmatpush.msra.mxu0 0.0
          %1402 = vmatpush.msra.mxu0 0.0
          %1403 = vmatpush.msra.mxu0 0.0
          %1404 = vmatpush.msra.mxu0 0.0
          %1405 = vmatpush.msra.mxu0 0.0
          %1406 = vmatpush.msra.mxu0 0.0
          %1407 = vmatpush.msra.mxu0 0.0
          %1408 = vmatpush.msra.mxu0 0.0
          %1409 = vmatpush.msra.mxu0 0.0
          %1410 = vmatpush.msra.mxu0 0.0
          %1411 = vmatpush.msra.mxu0 %v1374
          %1412 = vmatmul.f32.gmra.mxu0 %v1368
          %v1413 = vpop.f32.mrf.mxu0
          %v1414 = vadd.f32 0.0, %v1413
          %1415 = vdwg.mxu0
          %v1416 = vadd.f32 %v1341, %v1394
          %v1417 = vadd.f32 %v1342, %v1414
          %v1418 = vld [vmem:[#allocation2 + $0x4] sm:$0xff]
          %v1419 = vld [vmem:[#allocation2 + $0xc] sm:$0xf]
          %s1420 = scalar_lea.vmem %s175, 28
          %v1421 = vld [vmem:[%s1420] sm:$0xf]
          %1424 = vst [vmem:[#allocation1] ss:$2 sm:$0xff] %v1418
          %s1425 = scalar_lea.vmem [#allocation1], 16
          %1426 = vst [vmem:[%s1425] ss:$2 sm:$0xff] %v1419
          %v1427 = vld.sshfl [vmem:[#allocation1] sm:$0xff pattern:$0x75316420]
          %v1428 = vld.sshfl [vmem:[#allocation1 + $0x8] sm:$0xff pattern:$0x75316420]
          %v1429 = vld.sshfl [vmem:[#allocation1 + $0x10] sm:$0xff pattern:$0x75316420]
          %1430 = vrot.lane.b32.xlu0 %v1427, 64
          %v1431 = vpop.permute.xlu0 %1430
          %1432 = vrot.lane.b32.xlu0 %v1428, 64
          %v1433 = vpop.permute.xlu0 %1432
          %1434 = vrot.lane.b32.xlu0 %v1429, 64
          %v1435 = vpop.permute.xlu0 %1434
          %v1436 = vsel %vm1060, %v1431, %v1433
          %v1437 = vsel %vm1060, %v1433, %v1435
          %v1439 = vsel %vm191, %v1421, 0
          %v1441 = vsel %vm195, %v1436, 0
          %v1443 = vsel %vm195, %v1437, 0
          %1445 = vmatpush.msra.mxu0 0.0
          %1446 = vmatpush.msra.mxu0 0.0
          %1447 = vmatpush.msra.mxu0 0.0
          %1448 = vmatpush.msra.mxu0 0.0
          %1449 = vmatpush.msra.mxu0 0.0
          %1450 = vmatpush.msra.mxu0 0.0
          %1451 = vmatpush.msra.mxu0 0.0
          %1452 = vmatpush.msra.mxu0 0.0
          %1453 = vmatpush.msra.mxu0 0.0
          %1454 = vmatpush.msra.mxu0 0.0
          %1455 = vmatpush.msra.mxu0 0.0
          %1456 = vmatpush.msra.mxu0 0.0
          %1457 = vmatpush.msra.mxu0 0.0
          %1458 = vmatpush.msra.mxu0 0.0
          %1459 = vmatpush.msra.mxu0 0.0
          %1460 = vmatpush.msra.mxu0 %v1441
          %1461 = vmatmul.f32.gmra.mxu0 %v1439
          %v1462 = vpop.f32.mrf.mxu0
          %v1463 = vadd.f32 0.0, %v1462
          %1464 = vdwg.mxu0
          %1465 = vmatpush.msra.mxu0 0.0
          %1466 = vmatpush.msra.mxu0 0.0
          %1467 = vmatpush.msra.mxu0 0.0
          %1468 = vmatpush.msra.mxu0 0.0
          %1469 = vmatpush.msra.mxu0 0.0
          %1470 = vmatpush.msra.mxu0 0.0
          %1471 = vmatpush.msra.mxu0 0.0
          %1472 = vmatpush.msra.mxu0 0.0
          %1473 = vmatpush.msra.mxu0 0.0
          %1474 = vmatpush.msra.mxu0 0.0
          %1475 = vmatpush.msra.mxu0 0.0
          %1476 = vmatpush.msra.mxu0 0.0
          %1477 = vmatpush.msra.mxu0 0.0
          %1478 = vmatpush.msra.mxu0 0.0
          %1479 = vmatpush.msra.mxu0 0.0
          %1480 = vmatpush.msra.mxu0 %v1443
          %1481 = vmatmul.f32.gmra.mxu0 %v1439
          %v1482 = vpop.f32.mrf.mxu0
          %v1483 = vadd.f32 0.0, %v1482
          %1484 = vdwg.mxu0
          %v1485 = vadd.f32 %v1416, %v1463
          %v1486 = vadd.f32 %v1417, %v1483
          %v1487 = vld [vmem:[#allocation2 + $0x4] sm:$0xff]
          %v1488 = vld [vmem:[#allocation2 + $0xc] sm:$0xf]
          %1491 = vst [vmem:[#allocation1] ss:$2 sm:$0xff] %v1487
          %s1492 = scalar_lea.vmem [#allocation1], 16
          %1493 = vst [vmem:[%s1492] ss:$2 sm:$0xff] %v1488
          %v1494 = vld.sshfl [vmem:[#allocation1] sm:$0xff pattern:$0x75316420]
          %v1495 = vld.sshfl [vmem:[#allocation1 + $0x8] sm:$0xff pattern:$0x75316420]
          %v1496 = vld.sshfl [vmem:[#allocation1 + $0x10] sm:$0xff pattern:$0x75316420]
          %1497 = vrot.lane.b32.xlu0 %v1494, 60
          %v1498 = vpop.permute.xlu0 %1497
          %1499 = vrot.lane.b32.xlu0 %v1495, 60
          %v1500 = vpop.permute.xlu0 %1499
          %1501 = vrot.lane.b32.xlu0 %v1496, 60
          %v1502 = vpop.permute.xlu0 %1501
          %v1503 = vsel %vm1132, %v1498, %v1500
          %v1504 = vsel %vm1132, %v1500, %v1502
          %v1507 = vsel %vm1116, %v1503, 0.0
          %v1508 = vsel %vm1117, %v1504, 0.0
          %s1509 = scalar_lea.vmem %s175, 32
          %v1510 = vld [vmem:[%s1509] sm:$0xf]
          %v1512 = vsel %vm191, %v1510, 0
          %v1515 = vsel %vm195, %v1507, 0
          %v1518 = vsel %vm195, %v1508, 0
          %1520 = vmatpush.msra.mxu0 0.0
          %1521 = vmatpush.msra.mxu0 0.0
          %1522 = vmatpush.msra.mxu0 0.0
          %1523 = vmatpush.msra.mxu0 0.0
          %1524 = vmatpush.msra.mxu0 0.0
          %1525 = vmatpush.msra.mxu0 0.0
          %1526 = vmatpush.msra.mxu0 0.0
          %1527 = vmatpush.msra.mxu0 0.0
          %1528 = vmatpush.msra.mxu0 0.0
          %1529 = vmatpush.msra.mxu0 0.0
          %1530 = vmatpush.msra.mxu0 0.0
          %1531 = vmatpush.msra.mxu0 0.0
          %1532 = vmatpush.msra.mxu0 0.0
          %1533 = vmatpush.msra.mxu0 0.0
          %1534 = vmatpush.msra.mxu0 0.0
          %1535 = vmatpush.msra.mxu0 %v1515
          %1536 = vmatmul.f32.gmra.mxu0 %v1512
          %v1537 = vpop.f32.mrf.mxu0
          %v1538 = vadd.f32 0.0, %v1537
          %1539 = vdwg.mxu0
          %1540 = vmatpush.msra.mxu0 0.0
          %1541 = vmatpush.msra.mxu0 0.0
          %1542 = vmatpush.msra.mxu0 0.0
          %1543 = vmatpush.msra.mxu0 0.0
          %1544 = vmatpush.msra.mxu0 0.0
          %1545 = vmatpush.msra.mxu0 0.0
          %1546 = vmatpush.msra.mxu0 0.0
          %1547 = vmatpush.msra.mxu0 0.0
          %1548 = vmatpush.msra.mxu0 0.0
          %1549 = vmatpush.msra.mxu0 0.0
          %1550 = vmatpush.msra.mxu0 0.0
          %1551 = vmatpush.msra.mxu0 0.0
          %1552 = vmatpush.msra.mxu0 0.0
          %1553 = vmatpush.msra.mxu0 0.0
          %1554 = vmatpush.msra.mxu0 0.0
          %1555 = vmatpush.msra.mxu0 %v1518
          %1556 = vmatmul.f32.gmra.mxu0 %v1512
          %v1557 = vpop.f32.mrf.mxu0
          %v1558 = vadd.f32 0.0, %v1557
          %1559 = vdwg.mxu0
          %v1560 = vadd.f32 %v1485, %v1538
          %v1561 = vadd.f32 %v1486, %v1558
          %v1562 = vsel %vm195, %v1560, 0.0
          %v1563 = vsel %vm195, %v1561, 0.0
          %v1564 = vadd.f32 %v1562, %v1563
          %1565 = vadd.xlane.f32.xlu0 %v1564
          %v1566 = vpop.xlane.xlu0 %1565
          %v1567 = vmul.f32 %v1566, 0.00390625
          %v1568 = vsub.f32 %v1560, %v1567
          %v1569 = vsub.f32 %v1561, %v1567
          %v1570 = vmul.f32 %v1568, %v1568
          %v1571 = vmul.f32 %v1569, %v1569
          %v1572 = vsel %vm195, %v1570, 0.0
          %v1573 = vsel %vm195, %v1571, 0.0
          %v1574 = vadd.f32 %v1572, %v1573
          %1575 = vadd.xlane.f32.xlu0 %v1574
          %v1576 = vpop.xlane.xlu0 %1575
          %v1577 = vmul.f32 %v1576, 0.00390625
          %v1578 = vadd.f32 %v1577, 1e-05
          %v1579 = vrsqrt.pop %v1578
          %v1580 = vmul.f32 %v1579, %v1578
          %v1581 = vmul.f32 %v1580, %v1579
          %v1582 = vmul.f32 0.5, %v1581
          %v1583 = vsub.f32 1.5, %v1582
          %v1584 = vmul.f32 %v1579, %v1583
          %vm1585 = vweird.f32 %v1578
          %vm1586 = vweird.f32 %v1579
          %vm1587 = vmor %vm1585, %vm1586
          %v1588 = vsel %vm1587, %v1579, %v1584
          %v1589 = vmul.f32 %v1568, %v1588
          %v1590 = vmul.f32 %v1569, %v1588
          %v1591 = vmax.f32 %v1589, 0.0
          %v1592 = vmax.f32 %v1590, 0.0
          %v1595 = vrot.slane %v1592, 4
          %v1596 = vsel %vm195, %v1591, %v1595
          %1598 = vst [vmem:[%s165] sm:$0xff] %v1596
        $region44: #{tpu_custom_call.1} parent=27 // pred_fallthru
          _
        %s1599 = sand.u32 %s90, 1
        %s1600 = scalar_lea.sflag [#allocation4], %s1599
        %s1601 = sand.u32 %s90, 1
        %s1602 = smul.addr %s1601, 8
        %s1603 = scalar_lea.vmem [#allocation3], %s1602
        // Predicated region
        $region45: #{tpu_custom_call.1} parent=27 // pred_check
          %p1604 = pneg %p100
        $region46: #{tpu_custom_call.1} parent=27 // pred_check_branch
          %1606 = sbr.rel (%p1604) target = $region48
        $region47: #{tpu_custom_call.1} parent=27 // pred_region
          %1608 = vsyncadd %s1600, 0
          %s1609 = smul.addr %s21, 2
          %s1610 = smul.addr %s20, 6
          %s1611 = sadd.s32 %s1609, %s1610
          %s1612 = smul.addr %s1611, 4
          %s1613 = scalar_lea.hbm %s2, %s1612
          %s1615 = sshll.u32 %s1603, 4
          %s1616 = int_to_ptr.vmem [resolvable:$true] %s1615
          %s1617 = sshll.u32 %s1613, 4
          %s1618 = int_to_ptr.hbm [resolvable:$true] %s1617
          %1620 = dma.vmem_to_hbm [thread:$0]  %s1616, 128, %s1618, %s1600
        $region48: #{tpu_custom_call.1} parent=27 // pred_fallthru
          _
      $region28: #{tpu_custom_call.1} parent=5 // pred_fallthru
        _
      %p1621 = scmp.le.s32.totalorder 2, %s11
      // Predicated region
      $region49: #{tpu_custom_call.1} parent=5 // pred_check
        %p1622 = pneg %p1621
      $region50: #{tpu_custom_call.1} parent=5 // pred_check_branch
        %1624 = sbr.rel (%p1622) target = $region52
      $region51: #{tpu_custom_call.1} parent=5 // pred_region
        %s1625 = ssub.s32 %s11, 2
        // Predicated region
        $region53: #{tpu_custom_call.1} parent=51 // pred_check
          %p1626 = pneg %p106
        $region54: #{tpu_custom_call.1} parent=51 // pred_check_branch
          %1628 = sbr.rel (%p1626) target = $region56
        $region55: #{tpu_custom_call.1} parent=51 // pred_region
          %s1629 = sand.u32 %s91, 1
          %s1630 = scalar_lea.sflag [#allocation4], %s1629
          %s1631 = sand.u32 %s91, 1
          %s1632 = smul.addr %s1631, 8
          %s1633 = scalar_lea.vmem [#allocation3], %s1632
          %1635 = dma.done %s1630, 128
        $region56: #{tpu_custom_call.1} parent=51 // pred_fallthru
          _
      $region52: #{tpu_custom_call.1} parent=5 // pred_fallthru
        _
    $region6: #{tpu_custom_call.1} parent=1 // loop_footer
      %s15 = sadd.s32 1, %s11
    $region7: #{tpu_custom_call.1} parent=1 // loop_footer_branch
      %10 = sbr.rel target = $region3
    $region8: #{tpu_custom_call.1} parent=1 // loop_exit
      _
    %1636 = vsyncpa [#allocation4], 1
    %s1637 = scalar_lea.sflag [#allocation4], 1
    %1638 = vsyncpa %s1637, 1

</llo_original>
